<compile_context>
chip_gen: v7x
topology: tpu7x:2x2x1
jax: 0.10.0
libtpu: 0.0.40
codegen_flags: <defaults>
</compile_context>

<pallas_src>
import numpy as np
import jax
import jax.numpy as jnp
from jax import lax
from jax.experimental import pallas as pl
from jax.experimental.pallas import tpu as pltpu

NEG = -1e30   # finite "minus infinity" fill for padded slots (keep finite: -inf would NaN)
SUB = 8       # rows per inner subtile (one f32 vreg of output)


def _sparsemax_kernel(x_ref, o_ref):
    """x_ref / o_ref: (TB, M) f32 tiles, one sparsemax group per row."""
    tb, M = x_ref.shape

    # Hoisted loop invariants (JAX does not CSE broadcast_in_dim).
    sub_iota = lax.broadcasted_iota(jnp.int32, (SUB, M), 0)
    sel_r0 = sub_iota == 1                         # LHS row holding xs_a
    sel_r1 = sub_iota == 2                         # LHS row holding xs_b
    lhs_base = jnp.where(sub_iota == 0, 1.0, 0.0)  # row 0 = ones (counts), rest 0

    def subtile(s, carry):
        r0 = pl.multiple_of(s * SUB, SUB)
        xt = x_ref[pl.ds(r0, SUB), :]                      # (SUB, M)
        valid = xt > NEG * 0.5                             # real-node mask
        row_max = jnp.max(xt, axis=-1, keepdims=True)      # pads are NEG -> ignored
        xs = jnp.where(valid, xt - row_max, NEG)           # shifted values / NEG pad
        xs_t = xs.T                                        # (M, SUB): one tile transpose

        taus = []
        for pr in range(SUB // 2):                         # 4 statically unrolled pairs
            a, b = 2 * pr, 2 * pr + 1
            xs_a = xs[a:a + 1, :]                          # (1, M)
            xs_b = xs[b:b + 1, :]
            col_a = xs_t[:, a:a + 1]                       # (M, 1)
            col_b = xs_t[:, b:b + 1]

            # ge[j, i] = 1 iff z_j >= z_i.  Padded j hold NEG and never compare
            # >= a valid z_i; invalid i columns are discarded later by `& valid`.
            ge_a = jnp.where(col_a >= xs_a, 1.0, 0.0)      # (M, M)
            ge_b = jnp.where(col_b >= xs_b, 1.0, 0.0)
            rhs = jnp.concatenate([ge_a, ge_b], axis=1)    # (M, 2M)

            # LHS rows: 0 -> ones, 1 -> xs_a, 2 -> xs_b, rest 0.  One MXU matmul
            # yields counts for both rows and both support sums.
            lhs = jnp.where(sel_r0, jnp.broadcast_to(xs_a, (SUB, M)),
                            jnp.where(sel_r1, jnp.broadcast_to(xs_b, (SUB, M)),
                                      lhs_base))
            res = jnp.dot(lhs, rhs, preferred_element_type=jnp.float32)  # (SUB, 2M)

            for q, (xs_r, v_r, lo) in enumerate(
                    ((xs_a, valid[a:a + 1, :], 0),
                     (xs_b, valid[b:b + 1, :], M))):
                cnt = res[0:1, lo:lo + M]                  # c_i
                ssum = res[q + 1:q + 2, lo:lo + M]         # S_i
                supp = (1.0 + cnt * xs_r > ssum) & v_r     # support membership
                k = jnp.maximum(jnp.sum(jnp.where(supp, 1.0, 0.0),
                                        axis=-1, keepdims=True), 1.0)
                s_top = jnp.sum(jnp.where(supp, xs_r, 0.0),
                                axis=-1, keepdims=True)
                taus.append((s_top - 1.0) / k)             # (1, 1)

        tau_col = jnp.concatenate(taus, axis=0)            # (SUB, 1)
        # Vectorized epilogue + single aligned (SUB, M) store; NEG pads clamp to 0.
        o_ref[pl.ds(r0, SUB), :] = jnp.maximum(xs - tau_col, 0.0)
        return carry

    lax.fori_loop(0, tb // SUB, subtile, 0)


def _choose_tile_rows(num_groups):
    """Rows per grid tile: multiple of 8, >=2 grid steps when possible (v7x
    megacore), capped at 256 rows (128 KiB f32) for large batches."""
    b8 = max(SUB, ((num_groups + SUB - 1) // SUB) * SUB)
    if b8 <= SUB:
        return SUB
    return int(min(256, ((b8 + 15) // 16) * SUB))   # ~half the rows, rounded to 8


def sparsemax(x, batch, num_groups, max_nodes_pad=128, validate=False):
    """Flat sparsemax over groups (SparsemaxFunction.forward semantics).

    Assumes (like the torch reference) that `batch` is sorted / groups are
    contiguous.  Groups must have at most `max_nodes_pad` nodes; pass
    validate=True (outside jit) to check.
    """
    orig_dtype = x.dtype
    x = x.astype(jnp.float32)
    batch = batch.astype(jnp.int32)
    N = x.shape[0]
    M = max_nodes_pad
    assert M % 128 == 0, "max_nodes_pad must be a multiple of 128"

    counts = jax.ops.segment_sum(jnp.ones((N,), jnp.int32), batch,
                                 num_segments=num_groups)
    if validate:
        # Host sync; debug-only check (fails under jit by design).
        assert int(jnp.max(counts)) <= M, "a group has more than max_nodes_pad nodes"

    cum = jnp.concatenate([jnp.zeros((1,), counts.dtype),
                           jnp.cumsum(counts)[:-1]])
    pos = jnp.arange(N, dtype=jnp.int32) - cum[batch]      # position inside group

    TB = _choose_tile_rows(num_groups)
    B_pad = ((num_groups + TB - 1) // TB) * TB

    # NEG fill doubles as the validity mask (no separate mask input).
    dense_x = jnp.full((B_pad, M), NEG, jnp.float32)
    dense_x = dense_x.at[batch, pos].set(x, unique_indices=True,
                                         indices_are_sorted=True)

    dense_out = pl.pallas_call(
        _sparsemax_kernel,
        out_shape=jax.ShapeDtypeStruct((B_pad, M), jnp.float32),
        grid=(B_pad // TB,),
        in_specs=[pl.BlockSpec((TB, M), lambda i: (i, 0))],
        out_specs=pl.BlockSpec((TB, M), lambda i: (i, 0)),
        compiler_params=pltpu.CompilerParams(
            dimension_semantics=("parallel",)),
    )(dense_x)

    # TODO(synk): for very large N the XLA scatter/gather glue around the dense
    # (B_pad, 128) matrix dominates wall-clock; fold it into the kernel via
    # PrefetchScalarGridSpec with batch/pos (or per-group offsets) in SMEM.
    return dense_out[batch, pos].astype(orig_dtype)


def ref_sparsemax(x, batch, num_groups):
    """Pure-numpy reference reproducing the torch implementation (sort based)."""
    x = np.asarray(x, dtype=np.float64)
    batch = np.asarray(batch)
    out = np.zeros_like(x)
    for g in range(num_groups):
        idx = np.where(batch == g)[0]
        if idx.size == 0:
            continue
        z = x[idx] - x[idx].max()
        zs = np.sort(z)[::-1]
        cs = np.cumsum(zs)
        rho = np.arange(1, zs.size + 1)
        supp = rho * zs > cs - 1.0
        k = int(supp.sum())
        tau = (cs[k - 1] - 1.0) / k
        out[idx] = np.clip(z - tau, 0.0, None)
    return out


if __name__ == "__main__":
    key = jax.random.PRNGKey(0)
    k1, k2 = jax.random.split(key)

    # case 1: small ragged "graph batch": 4 groups with 5, 9, 3, 7 nodes -> N = 24
    sizes = [5, 9, 3, 7]
    num_groups = len(sizes)
    batch = jnp.concatenate(
        [jnp.full((s,), g, jnp.int32) for g, s in enumerate(sizes)])
    x = jax.random.normal(k1, (int(batch.shape[0]),), jnp.float32)

    out = jax.block_until_ready(sparsemax(x, batch, num_groups, validate=True))
    ref = ref_sparsemax(np.array(x), np.array(batch), num_groups)
    assert np.allclose(np.array(out), ref, atol=1e-5), (np.array(out), ref)

    # case 2: 20 groups (exercises multi-subtile / multi-grid-step paths)
    sizes2 = [((7 * g) % 13) + 1 for g in range(20)]
    num_groups2 = len(sizes2)
    batch2 = jnp.concatenate(
        [jnp.full((s,), g, jnp.int32) for g, s in enumerate(sizes2)])
    x2 = jax.random.normal(k2, (int(batch2.shape[0]),), jnp.float32)

    out2 = jax.block_until_ready(sparsemax(x2, batch2, num_groups2, validate=True))
    ref2 = ref_sparsemax(np.array(x2), np.array(batch2), num_groups2)
    assert np.allclose(np.array(out2), ref2, atol=1e-5), (np.array(out2), ref2)

    print("KERNEL_OK")
</pallas_src>

<mosaic_0001>
module attributes {stable_mosaic.version = 11 : i64} {
  func.func @_sparsemax_kernel(%arg0: i32, %arg1: memref<8x128xf32, #tpu.memory_space<vmem>>, %arg2: memref<8x128xf32, #tpu.memory_space<vmem>>) attributes {dimension_semantics = [#tpu.dimension_semantics<parallel>], iteration_bounds = array<i64: 1>, scalar_prefetch = 0 : i64, scratch_operands = 0 : i64, tpu.core_type = #tpu.core_type<tc>, window_params = [{transform_indices = @transform_0, window_bounds = array<i64: 8, 128>}, {transform_indices = @transform_1, window_bounds = array<i64: 8, 128>}]} {
    %0 = tpu.iota {dimensions = array<i32: 0>} : vector<8x128xi32>
    %c1_i32 = arith.constant 1 : i32
    %1 = vector.broadcast %c1_i32 : i32 to vector<8x128xi32>
    %2 = arith.cmpi eq, %0, %1 : vector<8x128xi32>
    %c2_i32 = arith.constant 2 : i32
    %3 = vector.broadcast %c2_i32 : i32 to vector<8x128xi32>
    %4 = arith.cmpi eq, %0, %3 : vector<8x128xi32>
    %c0_i32 = arith.constant 0 : i32
    %5 = vector.broadcast %c0_i32 : i32 to vector<8x128xi32>
    %6 = arith.cmpi eq, %0, %5 : vector<8x128xi32>
    %cst = arith.constant 1.000000e+00 : f32
    %cst_0 = arith.constant 0.000000e+00 : f32
    %7 = vector.broadcast %cst : f32 to vector<8x128xf32>
    %8 = vector.broadcast %cst_0 : f32 to vector<8x128xf32>
    %9 = arith.select %6, %7, %8 : vector<8x128xi1>, vector<8x128xf32>
    %c0_i32_1 = arith.constant 0 : i32
    %c8_i32 = arith.constant 8 : i32
    %10 = arith.muli %c0_i32_1, %c8_i32 : i32
    %11 = tpu.assume_multiple %10, 8 : i32
    %12 = arith.index_cast %11 : i32 to index
    %c0 = arith.constant 0 : index
    %13 = vector.load %arg1[%12, %c0] : memref<8x128xf32, #tpu.memory_space<vmem>>, vector<8x128xf32>
    %cst_2 = arith.constant -5.000000e+29 : f32
    %14 = vector.broadcast %cst_2 : f32 to vector<8x128xf32>
    %15 = arith.cmpf ogt, %13, %14 : vector<8x128xf32>
    %cst_3 = arith.constant dense<0xFF800000> : vector<8xf32>
    %16 = vector.multi_reduction <maximumf>, %13, %cst_3 [1] : vector<8x128xf32> to vector<8xf32>
    %17 = vector.shape_cast %16 : vector<8xf32> to vector<8x1xf32>
    %18 = vector.broadcast %17 : vector<8x1xf32> to vector<8x128xf32>
    %19 = arith.subf %13, %18 : vector<8x128xf32>
    %cst_4 = arith.constant -1.000000e+30 : f32
    %20 = vector.broadcast %cst_4 : f32 to vector<8x128xf32>
    %21 = arith.select %15, %19, %20 : vector<8x128xi1>, vector<8x128xf32>
    %22 = tpu.transpose %21, [1, 0] : vector<8x128xf32> -> vector<128x8xf32>
    %23 = vector.extract_strided_slice %21 {offsets = [0, 0], sizes = [1, 128], strides = [1, 1]} : vector<8x128xf32> to vector<1x128xf32>
    %24 = vector.extract_strided_slice %21 {offsets = [1, 0], sizes = [1, 128], strides = [1, 1]} : vector<8x128xf32> to vector<1x128xf32>
    %25 = vector.extract_strided_slice %22 {offsets = [0, 0], sizes = [128, 1], strides = [1, 1]} : vector<128x8xf32> to vector<128x1xf32>
    %26 = vector.extract_strided_slice %22 {offsets = [0, 1], sizes = [128, 1], strides = [1, 1]} : vector<128x8xf32> to vector<128x1xf32>
    %27 = vector.broadcast %25 : vector<128x1xf32> to vector<128x128xf32>
    %28 = vector.broadcast %23 : vector<1x128xf32> to vector<128x128xf32>
    %29 = arith.cmpf oge, %27, %28 : vector<128x128xf32>
    %cst_5 = arith.constant 1.000000e+00 : f32
    %cst_6 = arith.constant 0.000000e+00 : f32
    %30 = vector.broadcast %cst_5 : f32 to vector<128x128xf32>
    %31 = vector.broadcast %cst_6 : f32 to vector<128x128xf32>
    %32 = arith.select %29, %30, %31 : vector<128x128xi1>, vector<128x128xf32>
    %33 = vector.broadcast %26 : vector<128x1xf32> to vector<128x128xf32>
    %34 = vector.broadcast %24 : vector<1x128xf32> to vector<128x128xf32>
    %35 = arith.cmpf oge, %33, %34 : vector<128x128xf32>
    %cst_7 = arith.constant 1.000000e+00 : f32
    %cst_8 = arith.constant 0.000000e+00 : f32
    %36 = vector.broadcast %cst_7 : f32 to vector<128x128xf32>
    %37 = vector.broadcast %cst_8 : f32 to vector<128x128xf32>
    %38 = arith.select %35, %36, %37 : vector<128x128xi1>, vector<128x128xf32>
    %39 = tpu.concatenate %32, %38 in 1 : vector<128x128xf32>, vector<128x128xf32> -> vector<128x256xf32>
    %40 = vector.shape_cast %23 : vector<1x128xf32> to vector<1x128xf32>
    %41 = vector.broadcast %40 : vector<1x128xf32> to vector<8x128xf32>
    %42 = vector.shape_cast %24 : vector<1x128xf32> to vector<1x128xf32>
    %43 = vector.broadcast %42 : vector<1x128xf32> to vector<8x128xf32>
    %44 = arith.select %4, %43, %9 : vector<8x128xi1>, vector<8x128xf32>
    %45 = arith.select %2, %41, %44 : vector<8x128xi1>, vector<8x128xf32>
    %cst_9 = arith.constant dense<0.000000e+00> : vector<8x256xf32>
    %46 = tpu.matmul %45, %39, %cst_9 {dimension_numbers = #tpu.dot_dimension_numbers<[1], [0], [0], [1], [0, 0, 1, 1], [], []>} : vector<8x128xf32>, vector<128x256xf32>, vector<8x256xf32> -> vector<8x256xf32>
    %47 = vector.extract_strided_slice %15 {offsets = [0, 0], sizes = [1, 128], strides = [1, 1]} : vector<8x128xi1> to vector<1x128xi1>
    %48 = vector.extract_strided_slice %15 {offsets = [1, 0], sizes = [1, 128], strides = [1, 1]} : vector<8x128xi1> to vector<1x128xi1>
    %49 = vector.extract_strided_slice %46 {offsets = [0, 0], sizes = [1, 128], strides = [1, 1]} : vector<8x256xf32> to vector<1x128xf32>
    %50 = vector.extract_strided_slice %46 {offsets = [1, 0], sizes = [1, 128], strides = [1, 1]} : vector<8x256xf32> to vector<1x128xf32>
    %51 = arith.mulf %49, %23 : vector<1x128xf32>
    %cst_10 = arith.constant 1.000000e+00 : f32
    %52 = vector.broadcast %cst_10 : f32 to vector<1x128xf32>
    %53 = arith.addf %52, %51 : vector<1x128xf32>
    %54 = arith.cmpf ogt, %53, %50 : vector<1x128xf32>
    %55 = arith.andi %54, %47 : vector<1x128xi1>
    %cst_11 = arith.constant 1.000000e+00 : f32
    %cst_12 = arith.constant 0.000000e+00 : f32
    %56 = vector.broadcast %cst_11 : f32 to vector<1x128xf32>
    %57 = vector.broadcast %cst_12 : f32 to vector<1x128xf32>
    %58 = arith.select %55, %56, %57 : vector<1x128xi1>, vector<1x128xf32>
    %cst_13 = arith.constant dense<0.000000e+00> : vector<1xf32>
    %59 = vector.multi_reduction <add>, %58, %cst_13 [1] : vector<1x128xf32> to vector<1xf32>
    %60 = vector.shape_cast %59 : vector<1xf32> to vector<1x1xf32>
    %cst_14 = arith.constant 1.000000e+00 : f32
    %61 = vector.broadcast %cst_14 : f32 to vector<1x1xf32>
    %62 = arith.maximumf %60, %61 : vector<1x1xf32>
    %cst_15 = arith.constant 0.000000e+00 : f32
    %63 = vector.broadcast %cst_15 : f32 to vector<1x128xf32>
    %64 = arith.select %55, %23, %63 : vector<1x128xi1>, vector<1x128xf32>
    %cst_16 = arith.constant dense<0.000000e+00> : vector<1xf32>
    %65 = vector.multi_reduction <add>, %64, %cst_16 [1] : vector<1x128xf32> to vector<1xf32>
    %66 = vector.shape_cast %65 : vector<1xf32> to vector<1x1xf32>
    %cst_17 = arith.constant 1.000000e+00 : f32
    %67 = vector.broadcast %cst_17 : f32 to vector<1x1xf32>
    %68 = arith.subf %66, %67 : vector<1x1xf32>
    %69 = arith.divf %68, %62 : vector<1x1xf32>
    %70 = vector.extract_strided_slice %46 {offsets = [0, 128], sizes = [1, 128], strides = [1, 1]} : vector<8x256xf32> to vector<1x128xf32>
    %71 = vector.extract_strided_slice %46 {offsets = [2, 128], sizes = [1, 128], strides = [1, 1]} : vector<8x256xf32> to vector<1x128xf32>
    %72 = arith.mulf %70, %24 : vector<1x128xf32>
    %cst_18 = arith.constant 1.000000e+00 : f32
    %73 = vector.broadcast %cst_18 : f32 to vector<1x128xf32>
    %74 = arith.addf %73, %72 : vector<1x128xf32>
    %75 = arith.cmpf ogt, %74, %71 : vector<1x128xf32>
    %76 = arith.andi %75, %48 : vector<1x128xi1>
    %cst_19 = arith.constant 1.000000e+00 : f32
    %cst_20 = arith.constant 0.000000e+00 : f32
    %77 = vector.broadcast %cst_19 : f32 to vector<1x128xf32>
    %78 = vector.broadcast %cst_20 : f32 to vector<1x128xf32>
    %79 = arith.select %76, %77, %78 : vector<1x128xi1>, vector<1x128xf32>
    %cst_21 = arith.constant dense<0.000000e+00> : vector<1xf32>
    %80 = vector.multi_reduction <add>, %79, %cst_21 [1] : vector<1x128xf32> to vector<1xf32>
    %81 = vector.shape_cast %80 : vector<1xf32> to vector<1x1xf32>
    %cst_22 = arith.constant 1.000000e+00 : f32
    %82 = vector.broadcast %cst_22 : f32 to vector<1x1xf32>
    %83 = arith.maximumf %81, %82 : vector<1x1xf32>
    %cst_23 = arith.constant 0.000000e+00 : f32
    %84 = vector.broadcast %cst_23 : f32 to vector<1x128xf32>
    %85 = arith.select %76, %24, %84 : vector<1x128xi1>, vector<1x128xf32>
    %cst_24 = arith.constant dense<0.000000e+00> : vector<1xf32>
    %86 = vector.multi_reduction <add>, %85, %cst_24 [1] : vector<1x128xf32> to vector<1xf32>
    %87 = vector.shape_cast %86 : vector<1xf32> to vector<1x1xf32>
    %cst_25 = arith.constant 1.000000e+00 : f32
    %88 = vector.broadcast %cst_25 : f32 to vector<1x1xf32>
    %89 = arith.subf %87, %88 : vector<1x1xf32>
    %90 = arith.divf %89, %83 : vector<1x1xf32>
    %91 = vector.extract_strided_slice %21 {offsets = [2, 0], sizes = [1, 128], strides = [1, 1]} : vector<8x128xf32> to vector<1x128xf32>
    %92 = vector.extract_strided_slice %21 {offsets = [3, 0], sizes = [1, 128], strides = [1, 1]} : vector<8x128xf32> to vector<1x128xf32>
    %93 = vector.extract_strided_slice %22 {offsets = [0, 2], sizes = [128, 1], strides = [1, 1]} : vector<128x8xf32> to vector<128x1xf32>
    %94 = vector.extract_strided_slice %22 {offsets = [0, 3], sizes = [128, 1], strides = [1, 1]} : vector<128x8xf32> to vector<128x1xf32>
    %95 = vector.broadcast %93 : vector<128x1xf32> to vector<128x128xf32>
    %96 = vector.broadcast %91 : vector<1x128xf32> to vector<128x128xf32>
    %97 = arith.cmpf oge, %95, %96 : vector<128x128xf32>
    %cst_26 = arith.constant 1.000000e+00 : f32
    %cst_27 = arith.constant 0.000000e+00 : f32
    %98 = vector.broadcast %cst_26 : f32 to vector<128x128xf32>
    %99 = vector.broadcast %cst_27 : f32 to vector<128x128xf32>
    %100 = arith.select %97, %98, %99 : vector<128x128xi1>, vector<128x128xf32>
    %101 = vector.broadcast %94 : vector<128x1xf32> to vector<128x128xf32>
    %102 = vector.broadcast %92 : vector<1x128xf32> to vector<128x128xf32>
    %103 = arith.cmpf oge, %101, %102 : vector<128x128xf32>
    %cst_28 = arith.constant 1.000000e+00 : f32
    %cst_29 = arith.constant 0.000000e+00 : f32
    %104 = vector.broadcast %cst_28 : f32 to vector<128x128xf32>
    %105 = vector.broadcast %cst_29 : f32 to vector<128x128xf32>
    %106 = arith.select %103, %104, %105 : vector<128x128xi1>, vector<128x128xf32>
    %107 = tpu.concatenate %100, %106 in 1 : vector<128x128xf32>, vector<128x128xf32> -> vector<128x256xf32>
    %108 = vector.shape_cast %91 : vector<1x128xf32> to vector<1x128xf32>
    %109 = vector.broadcast %108 : vector<1x128xf32> to vector<8x128xf32>
    %110 = vector.shape_cast %92 : vector<1x128xf32> to vector<1x128xf32>
    %111 = vector.broadcast %110 : vector<1x128xf32> to vector<8x128xf32>
    %112 = arith.select %4, %111, %9 : vector<8x128xi1>, vector<8x128xf32>
    %113 = arith.select %2, %109, %112 : vector<8x128xi1>, vector<8x128xf32>
    %cst_30 = arith.constant dense<0.000000e+00> : vector<8x256xf32>
    %114 = tpu.matmul %113, %107, %cst_30 {dimension_numbers = #tpu.dot_dimension_numbers<[1], [0], [0], [1], [0, 0, 1, 1], [], []>} : vector<8x128xf32>, vector<128x256xf32>, vector<8x256xf32> -> vector<8x256xf32>
    %115 = vector.extract_strided_slice %15 {offsets = [2, 0], sizes = [1, 128], strides = [1, 1]} : vector<8x128xi1> to vector<1x128xi1>
    %116 = vector.extract_strided_slice %15 {offsets = [3, 0], sizes = [1, 128], strides = [1, 1]} : vector<8x128xi1> to vector<1x128xi1>
    %117 = vector.extract_strided_slice %114 {offsets = [0, 0], sizes = [1, 128], strides = [1, 1]} : vector<8x256xf32> to vector<1x128xf32>
    %118 = vector.extract_strided_slice %114 {offsets = [1, 0], sizes = [1, 128], strides = [1, 1]} : vector<8x256xf32> to vector<1x128xf32>
    %119 = arith.mulf %117, %91 : vector<1x128xf32>
    %cst_31 = arith.constant 1.000000e+00 : f32
    %120 = vector.broadcast %cst_31 : f32 to vector<1x128xf32>
    %121 = arith.addf %120, %119 : vector<1x128xf32>
    %122 = arith.cmpf ogt, %121, %118 : vector<1x128xf32>
    %123 = arith.andi %122, %115 : vector<1x128xi1>
    %cst_32 = arith.constant 1.000000e+00 : f32
    %cst_33 = arith.constant 0.000000e+00 : f32
    %124 = vector.broadcast %cst_32 : f32 to vector<1x128xf32>
    %125 = vector.broadcast %cst_33 : f32 to vector<1x128xf32>
    %126 = arith.select %123, %124, %125 : vector<1x128xi1>, vector<1x128xf32>
    %cst_34 = arith.constant dense<0.000000e+00> : vector<1xf32>
    %127 = vector.multi_reduction <add>, %126, %cst_34 [1] : vector<1x128xf32> to vector<1xf32>
    %128 = vector.shape_cast %127 : vector<1xf32> to vector<1x1xf32>
    %cst_35 = arith.constant 1.000000e+00 : f32
    %129 = vector.broadcast %cst_35 : f32 to vector<1x1xf32>
    %130 = arith.maximumf %128, %129 : vector<1x1xf32>
    %cst_36 = arith.constant 0.000000e+00 : f32
    %131 = vector.broadcast %cst_36 : f32 to vector<1x128xf32>
    %132 = arith.select %123, %91, %131 : vector<1x128xi1>, vector<1x128xf32>
    %cst_37 = arith.constant dense<0.000000e+00> : vector<1xf32>
    %133 = vector.multi_reduction <add>, %132, %cst_37 [1] : vector<1x128xf32> to vector<1xf32>
    %134 = vector.shape_cast %133 : vector<1xf32> to vector<1x1xf32>
    %cst_38 = arith.constant 1.000000e+00 : f32
    %135 = vector.broadcast %cst_38 : f32 to vector<1x1xf32>
    %136 = arith.subf %134, %135 : vector<1x1xf32>
    %137 = arith.divf %136, %130 : vector<1x1xf32>
    %138 = vector.extract_strided_slice %114 {offsets = [0, 128], sizes = [1, 128], strides = [1, 1]} : vector<8x256xf32> to vector<1x128xf32>
    %139 = vector.extract_strided_slice %114 {offsets = [2, 128], sizes = [1, 128], strides = [1, 1]} : vector<8x256xf32> to vector<1x128xf32>
    %140 = arith.mulf %138, %92 : vector<1x128xf32>
    %cst_39 = arith.constant 1.000000e+00 : f32
    %141 = vector.broadcast %cst_39 : f32 to vector<1x128xf32>
    %142 = arith.addf %141, %140 : vector<1x128xf32>
    %143 = arith.cmpf ogt, %142, %139 : vector<1x128xf32>
    %144 = arith.andi %143, %116 : vector<1x128xi1>
    %cst_40 = arith.constant 1.000000e+00 : f32
    %cst_41 = arith.constant 0.000000e+00 : f32
    %145 = vector.broadcast %cst_40 : f32 to vector<1x128xf32>
    %146 = vector.broadcast %cst_41 : f32 to vector<1x128xf32>
    %147 = arith.select %144, %145, %146 : vector<1x128xi1>, vector<1x128xf32>
    %cst_42 = arith.constant dense<0.000000e+00> : vector<1xf32>
    %148 = vector.multi_reduction <add>, %147, %cst_42 [1] : vector<1x128xf32> to vector<1xf32>
    %149 = vector.shape_cast %148 : vector<1xf32> to vector<1x1xf32>
    %cst_43 = arith.constant 1.000000e+00 : f32
    %150 = vector.broadcast %cst_43 : f32 to vector<1x1xf32>
    %151 = arith.maximumf %149, %150 : vector<1x1xf32>
    %cst_44 = arith.constant 0.000000e+00 : f32
    %152 = vector.broadcast %cst_44 : f32 to vector<1x128xf32>
    %153 = arith.select %144, %92, %152 : vector<1x128xi1>, vector<1x128xf32>
    %cst_45 = arith.constant dense<0.000000e+00> : vector<1xf32>
    %154 = vector.multi_reduction <add>, %153, %cst_45 [1] : vector<1x128xf32> to vector<1xf32>
    %155 = vector.shape_cast %154 : vector<1xf32> to vector<1x1xf32>
    %cst_46 = arith.constant 1.000000e+00 : f32
    %156 = vector.broadcast %cst_46 : f32 to vector<1x1xf32>
    %157 = arith.subf %155, %156 : vector<1x1xf32>
    %158 = arith.divf %157, %151 : vector<1x1xf32>
    %159 = vector.extract_strided_slice %21 {offsets = [4, 0], sizes = [1, 128], strides = [1, 1]} : vector<8x128xf32> to vector<1x128xf32>
    %160 = vector.extract_strided_slice %21 {offsets = [5, 0], sizes = [1, 128], strides = [1, 1]} : vector<8x128xf32> to vector<1x128xf32>
    %161 = vector.extract_strided_slice %22 {offsets = [0, 4], sizes = [128, 1], strides = [1, 1]} : vector<128x8xf32> to vector<128x1xf32>
    %162 = vector.extract_strided_slice %22 {offsets = [0, 5], sizes = [128, 1], strides = [1, 1]} : vector<128x8xf32> to vector<128x1xf32>
    %163 = vector.broadcast %161 : vector<128x1xf32> to vector<128x128xf32>
    %164 = vector.broadcast %159 : vector<1x128xf32> to vector<128x128xf32>
    %165 = arith.cmpf oge, %163, %164 : vector<128x128xf32>
    %cst_47 = arith.constant 1.000000e+00 : f32
    %cst_48 = arith.constant 0.000000e+00 : f32
    %166 = vector.broadcast %cst_47 : f32 to vector<128x128xf32>
    %167 = vector.broadcast %cst_48 : f32 to vector<128x128xf32>
    %168 = arith.select %165, %166, %167 : vector<128x128xi1>, vector<128x128xf32>
    %169 = vector.broadcast %162 : vector<128x1xf32> to vector<128x128xf32>
    %170 = vector.broadcast %160 : vector<1x128xf32> to vector<128x128xf32>
    %171 = arith.cmpf oge, %169, %170 : vector<128x128xf32>
    %cst_49 = arith.constant 1.000000e+00 : f32
    %cst_50 = arith.constant 0.000000e+00 : f32
    %172 = vector.broadcast %cst_49 : f32 to vector<128x128xf32>
    %173 = vector.broadcast %cst_50 : f32 to vector<128x128xf32>
    %174 = arith.select %171, %172, %173 : vector<128x128xi1>, vector<128x128xf32>
    %175 = tpu.concatenate %168, %174 in 1 : vector<128x128xf32>, vector<128x128xf32> -> vector<128x256xf32>
    %176 = vector.shape_cast %159 : vector<1x128xf32> to vector<1x128xf32>
    %177 = vector.broadcast %176 : vector<1x128xf32> to vector<8x128xf32>
    %178 = vector.shape_cast %160 : vector<1x128xf32> to vector<1x128xf32>
    %179 = vector.broadcast %178 : vector<1x128xf32> to vector<8x128xf32>
    %180 = arith.select %4, %179, %9 : vector<8x128xi1>, vector<8x128xf32>
    %181 = arith.select %2, %177, %180 : vector<8x128xi1>, vector<8x128xf32>
    %cst_51 = arith.constant dense<0.000000e+00> : vector<8x256xf32>
    %182 = tpu.matmul %181, %175, %cst_51 {dimension_numbers = #tpu.dot_dimension_numbers<[1], [0], [0], [1], [0, 0, 1, 1], [], []>} : vector<8x128xf32>, vector<128x256xf32>, vector<8x256xf32> -> vector<8x256xf32>
    %183 = vector.extract_strided_slice %15 {offsets = [4, 0], sizes = [1, 128], strides = [1, 1]} : vector<8x128xi1> to vector<1x128xi1>
    %184 = vector.extract_strided_slice %15 {offsets = [5, 0], sizes = [1, 128], strides = [1, 1]} : vector<8x128xi1> to vector<1x128xi1>
    %185 = vector.extract_strided_slice %182 {offsets = [0, 0], sizes = [1, 128], strides = [1, 1]} : vector<8x256xf32> to vector<1x128xf32>
    %186 = vector.extract_strided_slice %182 {offsets = [1, 0], sizes = [1, 128], strides = [1, 1]} : vector<8x256xf32> to vector<1x128xf32>
    %187 = arith.mulf %185, %159 : vector<1x128xf32>
    %cst_52 = arith.constant 1.000000e+00 : f32
    %188 = vector.broadcast %cst_52 : f32 to vector<1x128xf32>
    %189 = arith.addf %188, %187 : vector<1x128xf32>
    %190 = arith.cmpf ogt, %189, %186 : vector<1x128xf32>
    %191 = arith.andi %190, %183 : vector<1x128xi1>
    %cst_53 = arith.constant 1.000000e+00 : f32
    %cst_54 = arith.constant 0.000000e+00 : f32
    %192 = vector.broadcast %cst_53 : f32 to vector<1x128xf32>
    %193 = vector.broadcast %cst_54 : f32 to vector<1x128xf32>
    %194 = arith.select %191, %192, %193 : vector<1x128xi1>, vector<1x128xf32>
    %cst_55 = arith.constant dense<0.000000e+00> : vector<1xf32>
    %195 = vector.multi_reduction <add>, %194, %cst_55 [1] : vector<1x128xf32> to vector<1xf32>
    %196 = vector.shape_cast %195 : vector<1xf32> to vector<1x1xf32>
    %cst_56 = arith.constant 1.000000e+00 : f32
    %197 = vector.broadcast %cst_56 : f32 to vector<1x1xf32>
    %198 = arith.maximumf %196, %197 : vector<1x1xf32>
    %cst_57 = arith.constant 0.000000e+00 : f32
    %199 = vector.broadcast %cst_57 : f32 to vector<1x128xf32>
    %200 = arith.select %191, %159, %199 : vector<1x128xi1>, vector<1x128xf32>
    %cst_58 = arith.constant dense<0.000000e+00> : vector<1xf32>
    %201 = vector.multi_reduction <add>, %200, %cst_58 [1] : vector<1x128xf32> to vector<1xf32>
    %202 = vector.shape_cast %201 : vector<1xf32> to vector<1x1xf32>
    %cst_59 = arith.constant 1.000000e+00 : f32
    %203 = vector.broadcast %cst_59 : f32 to vector<1x1xf32>
    %204 = arith.subf %202, %203 : vector<1x1xf32>
    %205 = arith.divf %204, %198 : vector<1x1xf32>
    %206 = vector.extract_strided_slice %182 {offsets = [0, 128], sizes = [1, 128], strides = [1, 1]} : vector<8x256xf32> to vector<1x128xf32>
    %207 = vector.extract_strided_slice %182 {offsets = [2, 128], sizes = [1, 128], strides = [1, 1]} : vector<8x256xf32> to vector<1x128xf32>
    %208 = arith.mulf %206, %160 : vector<1x128xf32>
    %cst_60 = arith.constant 1.000000e+00 : f32
    %209 = vector.broadcast %cst_60 : f32 to vector<1x128xf32>
    %210 = arith.addf %209, %208 : vector<1x128xf32>
    %211 = arith.cmpf ogt, %210, %207 : vector<1x128xf32>
    %212 = arith.andi %211, %184 : vector<1x128xi1>
    %cst_61 = arith.constant 1.000000e+00 : f32
    %cst_62 = arith.constant 0.000000e+00 : f32
    %213 = vector.broadcast %cst_61 : f32 to vector<1x128xf32>
    %214 = vector.broadcast %cst_62 : f32 to vector<1x128xf32>
    %215 = arith.select %212, %213, %214 : vector<1x128xi1>, vector<1x128xf32>
    %cst_63 = arith.constant dense<0.000000e+00> : vector<1xf32>
    %216 = vector.multi_reduction <add>, %215, %cst_63 [1] : vector<1x128xf32> to vector<1xf32>
    %217 = vector.shape_cast %216 : vector<1xf32> to vector<1x1xf32>
    %cst_64 = arith.constant 1.000000e+00 : f32
    %218 = vector.broadcast %cst_64 : f32 to vector<1x1xf32>
    %219 = arith.maximumf %217, %218 : vector<1x1xf32>
    %cst_65 = arith.constant 0.000000e+00 : f32
    %220 = vector.broadcast %cst_65 : f32 to vector<1x128xf32>
    %221 = arith.select %212, %160, %220 : vector<1x128xi1>, vector<1x128xf32>
    %cst_66 = arith.constant dense<0.000000e+00> : vector<1xf32>
    %222 = vector.multi_reduction <add>, %221, %cst_66 [1] : vector<1x128xf32> to vector<1xf32>
    %223 = vector.shape_cast %222 : vector<1xf32> to vector<1x1xf32>
    %cst_67 = arith.constant 1.000000e+00 : f32
    %224 = vector.broadcast %cst_67 : f32 to vector<1x1xf32>
    %225 = arith.subf %223, %224 : vector<1x1xf32>
    %226 = arith.divf %225, %219 : vector<1x1xf32>
    %227 = vector.extract_strided_slice %21 {offsets = [6, 0], sizes = [1, 128], strides = [1, 1]} : vector<8x128xf32> to vector<1x128xf32>
    %228 = vector.extract_strided_slice %21 {offsets = [7, 0], sizes = [1, 128], strides = [1, 1]} : vector<8x128xf32> to vector<1x128xf32>
    %229 = vector.extract_strided_slice %22 {offsets = [0, 6], sizes = [128, 1], strides = [1, 1]} : vector<128x8xf32> to vector<128x1xf32>
    %230 = vector.extract_strided_slice %22 {offsets = [0, 7], sizes = [128, 1], strides = [1, 1]} : vector<128x8xf32> to vector<128x1xf32>
    %231 = vector.broadcast %229 : vector<128x1xf32> to vector<128x128xf32>
    %232 = vector.broadcast %227 : vector<1x128xf32> to vector<128x128xf32>
    %233 = arith.cmpf oge, %231, %232 : vector<128x128xf32>
    %cst_68 = arith.constant 1.000000e+00 : f32
    %cst_69 = arith.constant 0.000000e+00 : f32
    %234 = vector.broadcast %cst_68 : f32 to vector<128x128xf32>
    %235 = vector.broadcast %cst_69 : f32 to vector<128x128xf32>
    %236 = arith.select %233, %234, %235 : vector<128x128xi1>, vector<128x128xf32>
    %237 = vector.broadcast %230 : vector<128x1xf32> to vector<128x128xf32>
    %238 = vector.broadcast %228 : vector<1x128xf32> to vector<128x128xf32>
    %239 = arith.cmpf oge, %237, %238 : vector<128x128xf32>
    %cst_70 = arith.constant 1.000000e+00 : f32
    %cst_71 = arith.constant 0.000000e+00 : f32
    %240 = vector.broadcast %cst_70 : f32 to vector<128x128xf32>
    %241 = vector.broadcast %cst_71 : f32 to vector<128x128xf32>
    %242 = arith.select %239, %240, %241 : vector<128x128xi1>, vector<128x128xf32>
    %243 = tpu.concatenate %236, %242 in 1 : vector<128x128xf32>, vector<128x128xf32> -> vector<128x256xf32>
    %244 = vector.shape_cast %227 : vector<1x128xf32> to vector<1x128xf32>
    %245 = vector.broadcast %244 : vector<1x128xf32> to vector<8x128xf32>
    %246 = vector.shape_cast %228 : vector<1x128xf32> to vector<1x128xf32>
    %247 = vector.broadcast %246 : vector<1x128xf32> to vector<8x128xf32>
    %248 = arith.select %4, %247, %9 : vector<8x128xi1>, vector<8x128xf32>
    %249 = arith.select %2, %245, %248 : vector<8x128xi1>, vector<8x128xf32>
    %cst_72 = arith.constant dense<0.000000e+00> : vector<8x256xf32>
    %250 = tpu.matmul %249, %243, %cst_72 {dimension_numbers = #tpu.dot_dimension_numbers<[1], [0], [0], [1], [0, 0, 1, 1], [], []>} : vector<8x128xf32>, vector<128x256xf32>, vector<8x256xf32> -> vector<8x256xf32>
    %251 = vector.extract_strided_slice %15 {offsets = [6, 0], sizes = [1, 128], strides = [1, 1]} : vector<8x128xi1> to vector<1x128xi1>
    %252 = vector.extract_strided_slice %15 {offsets = [7, 0], sizes = [1, 128], strides = [1, 1]} : vector<8x128xi1> to vector<1x128xi1>
    %253 = vector.extract_strided_slice %250 {offsets = [0, 0], sizes = [1, 128], strides = [1, 1]} : vector<8x256xf32> to vector<1x128xf32>
    %254 = vector.extract_strided_slice %250 {offsets = [1, 0], sizes = [1, 128], strides = [1, 1]} : vector<8x256xf32> to vector<1x128xf32>
    %255 = arith.mulf %253, %227 : vector<1x128xf32>
    %cst_73 = arith.constant 1.000000e+00 : f32
    %256 = vector.broadcast %cst_73 : f32 to vector<1x128xf32>
    %257 = arith.addf %256, %255 : vector<1x128xf32>
    %258 = arith.cmpf ogt, %257, %254 : vector<1x128xf32>
    %259 = arith.andi %258, %251 : vector<1x128xi1>
    %cst_74 = arith.constant 1.000000e+00 : f32
    %cst_75 = arith.constant 0.000000e+00 : f32
    %260 = vector.broadcast %cst_74 : f32 to vector<1x128xf32>
    %261 = vector.broadcast %cst_75 : f32 to vector<1x128xf32>
    %262 = arith.select %259, %260, %261 : vector<1x128xi1>, vector<1x128xf32>
    %cst_76 = arith.constant dense<0.000000e+00> : vector<1xf32>
    %263 = vector.multi_reduction <add>, %262, %cst_76 [1] : vector<1x128xf32> to vector<1xf32>
    %264 = vector.shape_cast %263 : vector<1xf32> to vector<1x1xf32>
    %cst_77 = arith.constant 1.000000e+00 : f32
    %265 = vector.broadcast %cst_77 : f32 to vector<1x1xf32>
    %266 = arith.maximumf %264, %265 : vector<1x1xf32>
    %cst_78 = arith.constant 0.000000e+00 : f32
    %267 = vector.broadcast %cst_78 : f32 to vector<1x128xf32>
    %268 = arith.select %259, %227, %267 : vector<1x128xi1>, vector<1x128xf32>
    %cst_79 = arith.constant dense<0.000000e+00> : vector<1xf32>
    %269 = vector.multi_reduction <add>, %268, %cst_79 [1] : vector<1x128xf32> to vector<1xf32>
    %270 = vector.shape_cast %269 : vector<1xf32> to vector<1x1xf32>
    %cst_80 = arith.constant 1.000000e+00 : f32
    %271 = vector.broadcast %cst_80 : f32 to vector<1x1xf32>
    %272 = arith.subf %270, %271 : vector<1x1xf32>
    %273 = arith.divf %272, %266 : vector<1x1xf32>
    %274 = vector.extract_strided_slice %250 {offsets = [0, 128], sizes = [1, 128], strides = [1, 1]} : vector<8x256xf32> to vector<1x128xf32>
    %275 = vector.extract_strided_slice %250 {offsets = [2, 128], sizes = [1, 128], strides = [1, 1]} : vector<8x256xf32> to vector<1x128xf32>
    %276 = arith.mulf %274, %228 : vector<1x128xf32>
    %cst_81 = arith.constant 1.000000e+00 : f32
    %277 = vector.broadcast %cst_81 : f32 to vector<1x128xf32>
    %278 = arith.addf %277, %276 : vector<1x128xf32>
    %279 = arith.cmpf ogt, %278, %275 : vector<1x128xf32>
    %280 = arith.andi %279, %252 : vector<1x128xi1>
    %cst_82 = arith.constant 1.000000e+00 : f32
    %cst_83 = arith.constant 0.000000e+00 : f32
    %281 = vector.broadcast %cst_82 : f32 to vector<1x128xf32>
    %282 = vector.broadcast %cst_83 : f32 to vector<1x128xf32>
    %283 = arith.select %280, %281, %282 : vector<1x128xi1>, vector<1x128xf32>
    %cst_84 = arith.constant dense<0.000000e+00> : vector<1xf32>
    %284 = vector.multi_reduction <add>, %283, %cst_84 [1] : vector<1x128xf32> to vector<1xf32>
    %285 = vector.shape_cast %284 : vector<1xf32> to vector<1x1xf32>
    %cst_85 = arith.constant 1.000000e+00 : f32
    %286 = vector.broadcast %cst_85 : f32 to vector<1x1xf32>
    %287 = arith.maximumf %285, %286 : vector<1x1xf32>
    %cst_86 = arith.constant 0.000000e+00 : f32
    %288 = vector.broadcast %cst_86 : f32 to vector<1x128xf32>
    %289 = arith.select %280, %228, %288 : vector<1x128xi1>, vector<1x128xf32>
    %cst_87 = arith.constant dense<0.000000e+00> : vector<1xf32>
    %290 = vector.multi_reduction <add>, %289, %cst_87 [1] : vector<1x128xf32> to vector<1xf32>
    %291 = vector.shape_cast %290 : vector<1xf32> to vector<1x1xf32>
    %cst_88 = arith.constant 1.000000e+00 : f32
    %292 = vector.broadcast %cst_88 : f32 to vector<1x1xf32>
    %293 = arith.subf %291, %292 : vector<1x1xf32>
    %294 = arith.divf %293, %287 : vector<1x1xf32>
    %295 = tpu.concatenate %69, %90, %137, %158, %205, %226, %273, %294 in 0 : vector<1x1xf32>, vector<1x1xf32>, vector<1x1xf32>, vector<1x1xf32>, vector<1x1xf32>, vector<1x1xf32>, vector<1x1xf32>, vector<1x1xf32> -> vector<8x1xf32>
    %296 = vector.broadcast %295 : vector<8x1xf32> to vector<8x128xf32>
    %297 = arith.subf %21, %296 : vector<8x128xf32>
    %cst_89 = arith.constant 0.000000e+00 : f32
    %298 = vector.broadcast %cst_89 : f32 to vector<8x128xf32>
    %299 = arith.maximumf %297, %298 : vector<8x128xf32>
    %300 = arith.index_cast %11 : i32 to index
    %c0_90 = arith.constant 0 : index
    %301 = vector.load %arg2[%300, %c0_90] : memref<8x128xf32, #tpu.memory_space<vmem>>, vector<8x128xf32>
    tpu.vector_store %arg2[%300, %c0_90], %299 {strides = array<i32>} : memref<8x128xf32, #tpu.memory_space<vmem>>, vector<8x128xf32>,
    %c1_i32_91 = arith.constant 1 : i32
    return
  }
  func.func @transform_0(%arg0: i32) -> (i32, i32) {
    %c0_i32 = arith.constant 0 : i32
    %c0_i32_0 = arith.constant 0 : i32
    return %arg0, %c0_i32 : i32, i32
  }
  func.func @transform_1(%arg0: i32) -> (i32, i32) {
    %c0_i32 = arith.constant 0 : i32
    %c0_i32_0 = arith.constant 0 : i32
    return %arg0, %c0_i32 : i32, i32
  }
}

</mosaic_0001>

<llo_original>
// kernel: tpu_custom_call.1
$region0: #{tpu_custom_call.1}
  #allocation0 [shape = 'u32[]', space=smem, size = 0x4, offset = 0x4, fixed_abs, tag = 'smem constant byte address 0x4 - core index']
  #allocation1 [shape = 'u32[144,128]{1,0:T(1,128)}', space=vmem, size = 0x12000, scoped, tag = 'internal scratch']
  %s0 = inlined_call_operand.hbm [shape: f32[8,128], index: 0, kind: input, shape index: {}]
  %s1 = inlined_call_operand.hbm [shape: f32[8,128], index: 1, kind: output, shape index: {}]
  %s2 = sld [smem:[#allocation0]]
  $region18: #{tpu_custom_call.1} parent=0
    _
  %s4 = ssub.s32 1, %s2
  %s5 = scalar_select 0, %s4, %s2
  $region1: #{tpu_custom_call.1} parent=0
    #allocation2 [shape = 'u8[4096]{0}', space=vmem, size = 0x1000, scoped, tag = 'input window, operand 0, single buffered']
    #allocation3 [shape = 's32[1]{0}', space=sflag, size = 0x4, scoped, tag = 'scoped memory for tpu_custom_call.1']
    #allocation4 [shape = 's32[1]{0}', space=sflag, size = 0x4, scoped, tag = 'scoped memory for tpu_custom_call.1']
    #allocation5 [shape = 'u8[4096]{0}', space=vmem, size = 0x1000, scoped, tag = 'output window, operand 0, single buffered']
    %6 = vsyncpa [#allocation3], 0
    %7 = vsyncpa [#allocation4], 0
    // Predicated region
    $region2: #{tpu_custom_call.1} parent=1 // pred_check
      _
    $region3: #{tpu_custom_call.1} parent=1 // pred_check_branch
      %9 = sbr.rel (0) target = $region5
    $region4: #{tpu_custom_call.1} parent=1 // pred_region
      %s11 = ssub.s32 128, 128
      %12 = vsyncadd [#allocation3], %s11
      %s14 = sshll.u32 [#allocation2], 4
      %s15 = int_to_ptr.vmem [resolvable:$true] %s14
      %17 = dma.hbm_to_vmem [thread:$0]  %s0, 128, %s15, [#allocation3]
    $region5: #{tpu_custom_call.1} parent=1 // pred_fallthru
      _
    // Predicated region
    $region6: #{tpu_custom_call.1} parent=1 // pred_check
      _
    $region7: #{tpu_custom_call.1} parent=1 // pred_check_branch
      %19 = sbr.rel (0) target = $region9
    $region8: #{tpu_custom_call.1} parent=1 // pred_region
      %20 = dma.done [#allocation3], 128
    $region9: #{tpu_custom_call.1} parent=1 // pred_fallthru
      _
    %v21 = vlaneseq
    %v22 = vshrl.u32 %v21, 7
    %vm23 = vcmp.eq.s32.totalorder %v22, 1
    %vm24 = vcmp.eq.s32.totalorder %v22, 2
    %vm25 = vcmp.eq.s32.totalorder %v22, 0
    %v26 = vsel %vm25, 1.0, 0.0
    %v27 = vld [vmem:[#allocation2] sm:$0xff]
    %vm28 = vcmp.gt.f32.partialorder %v27, -5e+29
    %29 = vmax.xlane.f32.xlu0 %v27
    %v30 = vpop.xlane.xlu0 %29
    %v31 = vsub.f32 %v27, %v30
    %v32 = vsel %vm28, %v31, -1e+30
    %33 = vxpose.xlu0.b32.start [1/16] %v32, 128
    %34 = vxpose.xlu0.b32.cont [2/16] 0.0, 128
    %35 = vxpose.xlu0.b32.cont [3/16] 0.0, 128
    %36 = vxpose.xlu0.b32.cont [4/16] 0.0, 128
    %37 = vxpose.xlu0.b32.cont [5/16] 0.0, 128
    %38 = vxpose.xlu0.b32.cont [6/16] 0.0, 128
    %39 = vxpose.xlu0.b32.cont [7/16] 0.0, 128
    %40 = vxpose.xlu0.b32.cont [8/16] 0.0, 128
    %41 = vxpose.xlu0.b32.cont [9/16] 0.0, 128
    %42 = vxpose.xlu0.b32.cont [10/16] 0.0, 128
    %43 = vxpose.xlu0.b32.cont [11/16] 0.0, 128
    %44 = vxpose.xlu0.b32.cont [12/16] 0.0, 128
    %45 = vxpose.xlu0.b32.cont [13/16] 0.0, 128
    %46 = vxpose.xlu0.b32.cont [14/16] 0.0, 128
    %47 = vxpose.xlu0.b32.cont [15/16] 0.0, 128
    %48 = vxpose.xlu0.b32.end [16/16] 0.0, 128
    %v49 = vpop.trf.xlu0
    %v50 = vpop.trf.xlu0
    %v51 = vpop.trf.xlu0
    %v52 = vpop.trf.xlu0
    %v53 = vpop.trf.xlu0
    %v54 = vpop.trf.xlu0
    %v55 = vpop.trf.xlu0
    %v56 = vpop.trf.xlu0
    %v57 = vpop.trf.xlu0
    %v58 = vpop.trf.xlu0
    %v59 = vpop.trf.xlu0
    %v60 = vpop.trf.xlu0
    %v61 = vpop.trf.xlu0
    %v62 = vpop.trf.xlu0
    %v63 = vpop.trf.xlu0
    %v64 = vpop.trf.xlu0
    %66 = vset.pattern.permute.xlu0 0
    %67 = vperm.xlu0 %66, %v49
    %v68 = vpop.permute.xlu0 %67
    %71 = vset.pattern.permute.xlu0 0
    %72 = vperm.xlu0 %71, %v50
    %v73 = vpop.permute.xlu0 %72
    %76 = vset.pattern.permute.xlu0 0
    %77 = vperm.xlu0 %76, %v51
    %v78 = vpop.permute.xlu0 %77
    %81 = vset.pattern.permute.xlu0 0
    %82 = vperm.xlu0 %81, %v52
    %v83 = vpop.permute.xlu0 %82
    %86 = vset.pattern.permute.xlu0 0
    %87 = vperm.xlu0 %86, %v53
    %v88 = vpop.permute.xlu0 %87
    %91 = vset.pattern.permute.xlu0 0
    %92 = vperm.xlu0 %91, %v54
    %v93 = vpop.permute.xlu0 %92
    %96 = vset.pattern.permute.xlu0 0
    %97 = vperm.xlu0 %96, %v55
    %v98 = vpop.permute.xlu0 %97
    %101 = vset.pattern.permute.xlu0 0
    %102 = vperm.xlu0 %101, %v56
    %v103 = vpop.permute.xlu0 %102
    %106 = vset.pattern.permute.xlu0 0
    %107 = vperm.xlu0 %106, %v57
    %v108 = vpop.permute.xlu0 %107
    %111 = vset.pattern.permute.xlu0 0
    %112 = vperm.xlu0 %111, %v58
    %v113 = vpop.permute.xlu0 %112
    %116 = vset.pattern.permute.xlu0 0
    %117 = vperm.xlu0 %116, %v59
    %v118 = vpop.permute.xlu0 %117
    %121 = vset.pattern.permute.xlu0 0
    %122 = vperm.xlu0 %121, %v60
    %v123 = vpop.permute.xlu0 %122
    %126 = vset.pattern.permute.xlu0 0
    %127 = vperm.xlu0 %126, %v61
    %v128 = vpop.permute.xlu0 %127
    %131 = vset.pattern.permute.xlu0 0
    %132 = vperm.xlu0 %131, %v62
    %v133 = vpop.permute.xlu0 %132
    %136 = vset.pattern.permute.xlu0 0
    %137 = vperm.xlu0 %136, %v63
    %v138 = vpop.permute.xlu0 %137
    %141 = vset.pattern.permute.xlu0 0
    %142 = vperm.xlu0 %141, %v64
    %v143 = vpop.permute.xlu0 %142
    %v145 = vlaneseq
    %v146 = vshrl.u32 %v145, 7
    %v147 = vsub.s32 0, %v146
    %v148 = vrot.slane %v32, %v147
    %vm149 = vcmp.ge.f32.partialorder %v68, %v148
    %vm150 = vcmp.ge.f32.partialorder %v73, %v148
    %vm151 = vcmp.ge.f32.partialorder %v78, %v148
    %vm152 = vcmp.ge.f32.partialorder %v83, %v148
    %vm153 = vcmp.ge.f32.partialorder %v88, %v148
    %vm154 = vcmp.ge.f32.partialorder %v93, %v148
    %vm155 = vcmp.ge.f32.partialorder %v98, %v148
    %vm156 = vcmp.ge.f32.partialorder %v103, %v148
    %vm157 = vcmp.ge.f32.partialorder %v108, %v148
    %vm158 = vcmp.ge.f32.partialorder %v113, %v148
    %vm159 = vcmp.ge.f32.partialorder %v118, %v148
    %vm160 = vcmp.ge.f32.partialorder %v123, %v148
    %vm161 = vcmp.ge.f32.partialorder %v128, %v148
    %vm162 = vcmp.ge.f32.partialorder %v133, %v148
    %vm163 = vcmp.ge.f32.partialorder %v138, %v148
    %vm164 = vcmp.ge.f32.partialorder %v143, %v148
    %v165 = vsel %vm149, 1.0, 0.0
    %v166 = vsel %vm150, 1.0, 0.0
    %v167 = vsel %vm151, 1.0, 0.0
    %v168 = vsel %vm152, 1.0, 0.0
    %v169 = vsel %vm153, 1.0, 0.0
    %v170 = vsel %vm154, 1.0, 0.0
    %v171 = vsel %vm155, 1.0, 0.0
    %v172 = vsel %vm156, 1.0, 0.0
    %v173 = vsel %vm157, 1.0, 0.0
    %v174 = vsel %vm158, 1.0, 0.0
    %v175 = vsel %vm159, 1.0, 0.0
    %v176 = vsel %vm160, 1.0, 0.0
    %v177 = vsel %vm161, 1.0, 0.0
    %v178 = vsel %vm162, 1.0, 0.0
    %v179 = vsel %vm163, 1.0, 0.0
    %v180 = vsel %vm164, 1.0, 0.0
    %181 = vset.pattern.permute.xlu0 1
    %182 = vperm.xlu0 %181, %v49
    %v183 = vpop.permute.xlu0 %182
    %185 = vset.pattern.permute.xlu0 1
    %186 = vperm.xlu0 %185, %v50
    %v187 = vpop.permute.xlu0 %186
    %189 = vset.pattern.permute.xlu0 1
    %190 = vperm.xlu0 %189, %v51
    %v191 = vpop.permute.xlu0 %190
    %193 = vset.pattern.permute.xlu0 1
    %194 = vperm.xlu0 %193, %v52
    %v195 = vpop.permute.xlu0 %194
    %197 = vset.pattern.permute.xlu0 1
    %198 = vperm.xlu0 %197, %v53
    %v199 = vpop.permute.xlu0 %198
    %201 = vset.pattern.permute.xlu0 1
    %202 = vperm.xlu0 %201, %v54
    %v203 = vpop.permute.xlu0 %202
    %205 = vset.pattern.permute.xlu0 1
    %206 = vperm.xlu0 %205, %v55
    %v207 = vpop.permute.xlu0 %206
    %209 = vset.pattern.permute.xlu0 1
    %210 = vperm.xlu0 %209, %v56
    %v211 = vpop.permute.xlu0 %210
    %213 = vset.pattern.permute.xlu0 1
    %214 = vperm.xlu0 %213, %v57
    %v215 = vpop.permute.xlu0 %214
    %217 = vset.pattern.permute.xlu0 1
    %218 = vperm.xlu0 %217, %v58
    %v219 = vpop.permute.xlu0 %218
    %221 = vset.pattern.permute.xlu0 1
    %222 = vperm.xlu0 %221, %v59
    %v223 = vpop.permute.xlu0 %222
    %225 = vset.pattern.permute.xlu0 1
    %226 = vperm.xlu0 %225, %v60
    %v227 = vpop.permute.xlu0 %226
    %229 = vset.pattern.permute.xlu0 1
    %230 = vperm.xlu0 %229, %v61
    %v231 = vpop.permute.xlu0 %230
    %233 = vset.pattern.permute.xlu0 1
    %234 = vperm.xlu0 %233, %v62
    %v235 = vpop.permute.xlu0 %234
    %237 = vset.pattern.permute.xlu0 1
    %238 = vperm.xlu0 %237, %v63
    %v239 = vpop.permute.xlu0 %238
    %241 = vset.pattern.permute.xlu0 1
    %242 = vperm.xlu0 %241, %v64
    %v243 = vpop.permute.xlu0 %242
    %v245 = vlaneseq
    %v246 = vshrl.u32 %v245, 7
    %v247 = vsub.s32 1, %v246
    %v248 = vrot.slane %v32, %v247
    %vm249 = vcmp.ge.f32.partialorder %v183, %v248
    %vm250 = vcmp.ge.f32.partialorder %v187, %v248
    %vm251 = vcmp.ge.f32.partialorder %v191, %v248
    %vm252 = vcmp.ge.f32.partialorder %v195, %v248
    %vm253 = vcmp.ge.f32.partialorder %v199, %v248
    %vm254 = vcmp.ge.f32.partialorder %v203, %v248
    %vm255 = vcmp.ge.f32.partialorder %v207, %v248
    %vm256 = vcmp.ge.f32.partialorder %v211, %v248
    %vm257 = vcmp.ge.f32.partialorder %v215, %v248
    %vm258 = vcmp.ge.f32.partialorder %v219, %v248
    %vm259 = vcmp.ge.f32.partialorder %v223, %v248
    %vm260 = vcmp.ge.f32.partialorder %v227, %v248
    %vm261 = vcmp.ge.f32.partialorder %v231, %v248
    %vm262 = vcmp.ge.f32.partialorder %v235, %v248
    %vm263 = vcmp.ge.f32.partialorder %v239, %v248
    %vm264 = vcmp.ge.f32.partialorder %v243, %v248
    %v265 = vsel %vm249, 1.0, 0.0
    %v266 = vsel %vm250, 1.0, 0.0
    %v267 = vsel %vm251, 1.0, 0.0
    %v268 = vsel %vm252, 1.0, 0.0
    %v269 = vsel %vm253, 1.0, 0.0
    %v270 = vsel %vm254, 1.0, 0.0
    %v271 = vsel %vm255, 1.0, 0.0
    %v272 = vsel %vm256, 1.0, 0.0
    %v273 = vsel %vm257, 1.0, 0.0
    %v274 = vsel %vm258, 1.0, 0.0
    %v275 = vsel %vm259, 1.0, 0.0
    %v276 = vsel %vm260, 1.0, 0.0
    %v277 = vsel %vm261, 1.0, 0.0
    %v278 = vsel %vm262, 1.0, 0.0
    %v279 = vsel %vm263, 1.0, 0.0
    %v280 = vsel %vm264, 1.0, 0.0
    %v281 = vsel %vm24, %v248, %v26
    %v282 = vsel %vm23, %v148, %v281
    %283 = vmatprep.subr.mxu0 %v265
    %284 = vmatpush1.msra.mxu0 %v165
    %285 = vmatprep.subr.mxu0 %v266
    %286 = vmatpush1.msra.mxu0 %v166
    %287 = vmatprep.subr.mxu0 %v267
    %288 = vmatpush1.msra.mxu0 %v167
    %289 = vmatprep.subr.mxu0 %v268
    %290 = vmatpush1.msra.mxu0 %v168
    %291 = vmatprep.subr.mxu0 %v269
    %292 = vmatpush1.msra.mxu0 %v169
    %293 = vmatprep.subr.mxu0 %v270
    %294 = vmatpush1.msra.mxu0 %v170
    %295 = vmatprep.subr.mxu0 %v271
    %296 = vmatpush1.msra.mxu0 %v171
    %297 = vmatprep.subr.mxu0 %v272
    %298 = vmatpush1.msra.mxu0 %v172
    %299 = vmatprep.subr.mxu0 %v273
    %300 = vmatpush1.msra.mxu0 %v173
    %301 = vmatprep.subr.mxu0 %v274
    %302 = vmatpush1.msra.mxu0 %v174
    %303 = vmatprep.subr.mxu0 %v275
    %304 = vmatpush1.msra.mxu0 %v175
    %305 = vmatprep.subr.mxu0 %v276
    %306 = vmatpush1.msra.mxu0 %v176
    %307 = vmatprep.subr.mxu0 %v277
    %308 = vmatpush1.msra.mxu0 %v177
    %309 = vmatprep.subr.mxu0 %v278
    %310 = vmatpush1.msra.mxu0 %v178
    %311 = vmatprep.subr.mxu0 %v279
    %312 = vmatpush1.msra.mxu0 %v179
    %313 = vmatprep.subr.mxu0 %v280
    %314 = vmatpush1.msra.mxu0 %v180
    %315 = vmatprep.subr.mxu0 0.0
    %316 = vmatpush1.msra.mxu0 0.0
    %317 = vmatprep.subr.mxu0 0.0
    %318 = vmatpush1.msra.mxu0 0.0
    %319 = vmatprep.subr.mxu0 0.0
    %320 = vmatpush1.msra.mxu0 0.0
    %321 = vmatprep.subr.mxu0 0.0
    %322 = vmatpush1.msra.mxu0 0.0
    %323 = vmatprep.subr.mxu0 0.0
    %324 = vmatpush1.msra.mxu0 0.0
    %325 = vmatprep.subr.mxu0 0.0
    %326 = vmatpush1.msra.mxu0 0.0
    %327 = vmatprep.subr.mxu0 0.0
    %328 = vmatpush1.msra.mxu0 0.0
    %329 = vmatprep.subr.mxu0 0.0
    %330 = vmatpush1.msra.mxu0 0.0
    %331 = vmatprep.subr.mxu0 0.0
    %332 = vmatpush1.msra.mxu0 0.0
    %333 = vmatprep.subr.mxu0 0.0
    %334 = vmatpush1.msra.mxu0 0.0
    %335 = vmatprep.subr.mxu0 0.0
    %336 = vmatpush1.msra.mxu0 0.0
    %337 = vmatprep.subr.mxu0 0.0
    %338 = vmatpush1.msra.mxu0 0.0
    %339 = vmatprep.subr.mxu0 0.0
    %340 = vmatpush1.msra.mxu0 0.0
    %341 = vmatprep.subr.mxu0 0.0
    %342 = vmatpush1.msra.mxu0 0.0
    %343 = vmatprep.subr.mxu0 0.0
    %344 = vmatpush1.msra.mxu0 0.0
    %345 = vmatprep.subr.mxu0 0.0
    %346 = vmatpush1.msra.mxu0 0.0
    %347 = vmatprep.mubr.f32.mxu0 0.0
    %348 = vmatmul.mubr.f32.gmra.mrb[0].mxu0 %v282
    %v349 = vpop.f32.mrb[0].mxu0
    %v350 = vadd.f32 0.0, %v349
    %v351 = vpop.f32.mrb[0].mxu0
    %v352 = vadd.f32 0.0, %v351
    %353 = vdwg.mxu0
    %v354 = vmul.f32 %v350, %v32
    %v355 = vadd.f32 %v354, 1.0
    %v357 = vrot.slane %v350, 1
    %vm359 = vcmp.gt.f32.partialorder %v355, %v357
    %vm360 = vmand %vm359, %vm28
    %v361 = vsel %vm360, 1.0, 0.0
    %vm362 = vcmask 1040384
    %v363 = vsel %vm362, %v361, 0.0
    %364 = vadd.xlane.f32.xlu0 %v363
    %v365 = vpop.xlane.xlu0 %364
    %v366 = vmax.f32 %v365, 1.0
    %v367 = vsel %vm360, %v32, 0.0
    %v368 = vsel %vm362, %v367, 0.0
    %369 = vadd.xlane.f32.xlu0 %v368
    %v370 = vpop.xlane.xlu0 %369
    %v371 = vsub.f32 %v370, 1.0
    %v372 = vrcp.pop %v366
    %v373 = vmul.f32 %v371, %v372
    %v375 = vrot.slane %v32, 1
    %v377 = vmul.f32 %v352, %v375
    %v378 = vadd.f32 %v377, 1.0
    %v380 = vrot.slane %v352, 2
    %vm382 = vcmp.gt.f32.partialorder %v378, %v380
    %v383 = vsel %vm28, 1, 0
    %v384 = vrot.slane %v383, 1
    %vm385 = vcmp.ne.s32.totalorder %v384, 0
    %vm386 = vmand %vm382, %vm385
    %v387 = vsel %vm386, 1.0, 0.0
    %v388 = vsel %vm362, %v387, 0.0
    %389 = vadd.xlane.f32.xlu0 %v388
    %v390 = vpop.xlane.xlu0 %389
    %v391 = vmax.f32 %v390, 1.0
    %v392 = vsel %vm386, %v375, 0.0
    %v393 = vsel %vm362, %v392, 0.0
    %394 = vadd.xlane.f32.xlu0 %v393
    %v395 = vpop.xlane.xlu0 %394
    %v396 = vsub.f32 %v395, 1.0
    %v397 = vrcp.pop %v391
    %v398 = vmul.f32 %v396, %v397
    %399 = vset.pattern.permute.xlu0 2
    %400 = vperm.xlu0 %399, %v49
    %v401 = vpop.permute.xlu0 %400
    %403 = vset.pattern.permute.xlu0 2
    %404 = vperm.xlu0 %403, %v50
    %v405 = vpop.permute.xlu0 %404
    %407 = vset.pattern.permute.xlu0 2
    %408 = vperm.xlu0 %407, %v51
    %v409 = vpop.permute.xlu0 %408
    %411 = vset.pattern.permute.xlu0 2
    %412 = vperm.xlu0 %411, %v52
    %v413 = vpop.permute.xlu0 %412
    %415 = vset.pattern.permute.xlu0 2
    %416 = vperm.xlu0 %415, %v53
    %v417 = vpop.permute.xlu0 %416
    %419 = vset.pattern.permute.xlu0 2
    %420 = vperm.xlu0 %419, %v54
    %v421 = vpop.permute.xlu0 %420
    %423 = vset.pattern.permute.xlu0 2
    %424 = vperm.xlu0 %423, %v55
    %v425 = vpop.permute.xlu0 %424
    %427 = vset.pattern.permute.xlu0 2
    %428 = vperm.xlu0 %427, %v56
    %v429 = vpop.permute.xlu0 %428
    %431 = vset.pattern.permute.xlu0 2
    %432 = vperm.xlu0 %431, %v57
    %v433 = vpop.permute.xlu0 %432
    %435 = vset.pattern.permute.xlu0 2
    %436 = vperm.xlu0 %435, %v58
    %v437 = vpop.permute.xlu0 %436
    %439 = vset.pattern.permute.xlu0 2
    %440 = vperm.xlu0 %439, %v59
    %v441 = vpop.permute.xlu0 %440
    %443 = vset.pattern.permute.xlu0 2
    %444 = vperm.xlu0 %443, %v60
    %v445 = vpop.permute.xlu0 %444
    %447 = vset.pattern.permute.xlu0 2
    %448 = vperm.xlu0 %447, %v61
    %v449 = vpop.permute.xlu0 %448
    %451 = vset.pattern.permute.xlu0 2
    %452 = vperm.xlu0 %451, %v62
    %v453 = vpop.permute.xlu0 %452
    %455 = vset.pattern.permute.xlu0 2
    %456 = vperm.xlu0 %455, %v63
    %v457 = vpop.permute.xlu0 %456
    %459 = vset.pattern.permute.xlu0 2
    %460 = vperm.xlu0 %459, %v64
    %v461 = vpop.permute.xlu0 %460
    %v463 = vlaneseq
    %v464 = vshrl.u32 %v463, 7
    %v465 = vsub.s32 2, %v464
    %v466 = vrot.slane %v32, %v465
    %vm467 = vcmp.ge.f32.partialorder %v401, %v466
    %vm468 = vcmp.ge.f32.partialorder %v405, %v466
    %vm469 = vcmp.ge.f32.partialorder %v409, %v466
    %vm470 = vcmp.ge.f32.partialorder %v413, %v466
    %vm471 = vcmp.ge.f32.partialorder %v417, %v466
    %vm472 = vcmp.ge.f32.partialorder %v421, %v466
    %vm473 = vcmp.ge.f32.partialorder %v425, %v466
    %vm474 = vcmp.ge.f32.partialorder %v429, %v466
    %vm475 = vcmp.ge.f32.partialorder %v433, %v466
    %vm476 = vcmp.ge.f32.partialorder %v437, %v466
    %vm477 = vcmp.ge.f32.partialorder %v441, %v466
    %vm478 = vcmp.ge.f32.partialorder %v445, %v466
    %vm479 = vcmp.ge.f32.partialorder %v449, %v466
    %vm480 = vcmp.ge.f32.partialorder %v453, %v466
    %vm481 = vcmp.ge.f32.partialorder %v457, %v466
    %vm482 = vcmp.ge.f32.partialorder %v461, %v466
    %v483 = vsel %vm467, 1.0, 0.0
    %v484 = vsel %vm468, 1.0, 0.0
    %v485 = vsel %vm469, 1.0, 0.0
    %v486 = vsel %vm470, 1.0, 0.0
    %v487 = vsel %vm471, 1.0, 0.0
    %v488 = vsel %vm472, 1.0, 0.0
    %v489 = vsel %vm473, 1.0, 0.0
    %v490 = vsel %vm474, 1.0, 0.0
    %v491 = vsel %vm475, 1.0, 0.0
    %v492 = vsel %vm476, 1.0, 0.0
    %v493 = vsel %vm477, 1.0, 0.0
    %v494 = vsel %vm478, 1.0, 0.0
    %v495 = vsel %vm479, 1.0, 0.0
    %v496 = vsel %vm480, 1.0, 0.0
    %v497 = vsel %vm481, 1.0, 0.0
    %v498 = vsel %vm482, 1.0, 0.0
    %499 = vset.pattern.permute.xlu0 3
    %500 = vperm.xlu0 %499, %v49
    %v501 = vpop.permute.xlu0 %500
    %503 = vset.pattern.permute.xlu0 3
    %504 = vperm.xlu0 %503, %v50
    %v505 = vpop.permute.xlu0 %504
    %507 = vset.pattern.permute.xlu0 3
    %508 = vperm.xlu0 %507, %v51
    %v509 = vpop.permute.xlu0 %508
    %511 = vset.pattern.permute.xlu0 3
    %512 = vperm.xlu0 %511, %v52
    %v513 = vpop.permute.xlu0 %512
    %515 = vset.pattern.permute.xlu0 3
    %516 = vperm.xlu0 %515, %v53
    %v517 = vpop.permute.xlu0 %516
    %519 = vset.pattern.permute.xlu0 3
    %520 = vperm.xlu0 %519, %v54
    %v521 = vpop.permute.xlu0 %520
    %523 = vset.pattern.permute.xlu0 3
    %524 = vperm.xlu0 %523, %v55
    %v525 = vpop.permute.xlu0 %524
    %527 = vset.pattern.permute.xlu0 3
    %528 = vperm.xlu0 %527, %v56
    %v529 = vpop.permute.xlu0 %528
    %531 = vset.pattern.permute.xlu0 3
    %532 = vperm.xlu0 %531, %v57
    %v533 = vpop.permute.xlu0 %532
    %535 = vset.pattern.permute.xlu0 3
    %536 = vperm.xlu0 %535, %v58
    %v537 = vpop.permute.xlu0 %536
    %539 = vset.pattern.permute.xlu0 3
    %540 = vperm.xlu0 %539, %v59
    %v541 = vpop.permute.xlu0 %540
    %543 = vset.pattern.permute.xlu0 3
    %544 = vperm.xlu0 %543, %v60
    %v545 = vpop.permute.xlu0 %544
    %547 = vset.pattern.permute.xlu0 3
    %548 = vperm.xlu0 %547, %v61
    %v549 = vpop.permute.xlu0 %548
    %551 = vset.pattern.permute.xlu0 3
    %552 = vperm.xlu0 %551, %v62
    %v553 = vpop.permute.xlu0 %552
    %555 = vset.pattern.permute.xlu0 3
    %556 = vperm.xlu0 %555, %v63
    %v557 = vpop.permute.xlu0 %556
    %559 = vset.pattern.permute.xlu0 3
    %560 = vperm.xlu0 %559, %v64
    %v561 = vpop.permute.xlu0 %560
    %v563 = vlaneseq
    %v564 = vshrl.u32 %v563, 7
    %v565 = vsub.s32 3, %v564
    %v566 = vrot.slane %v32, %v565
    %vm567 = vcmp.ge.f32.partialorder %v501, %v566
    %vm568 = vcmp.ge.f32.partialorder %v505, %v566
    %vm569 = vcmp.ge.f32.partialorder %v509, %v566
    %vm570 = vcmp.ge.f32.partialorder %v513, %v566
    %vm571 = vcmp.ge.f32.partialorder %v517, %v566
    %vm572 = vcmp.ge.f32.partialorder %v521, %v566
    %vm573 = vcmp.ge.f32.partialorder %v525, %v566
    %vm574 = vcmp.ge.f32.partialorder %v529, %v566
    %vm575 = vcmp.ge.f32.partialorder %v533, %v566
    %vm576 = vcmp.ge.f32.partialorder %v537, %v566
    %vm577 = vcmp.ge.f32.partialorder %v541, %v566
    %vm578 = vcmp.ge.f32.partialorder %v545, %v566
    %vm579 = vcmp.ge.f32.partialorder %v549, %v566
    %vm580 = vcmp.ge.f32.partialorder %v553, %v566
    %vm581 = vcmp.ge.f32.partialorder %v557, %v566
    %vm582 = vcmp.ge.f32.partialorder %v561, %v566
    %v583 = vsel %vm567, 1.0, 0.0
    %v584 = vsel %vm568, 1.0, 0.0
    %v585 = vsel %vm569, 1.0, 0.0
    %v586 = vsel %vm570, 1.0, 0.0
    %v587 = vsel %vm571, 1.0, 0.0
    %v588 = vsel %vm572, 1.0, 0.0
    %v589 = vsel %vm573, 1.0, 0.0
    %v590 = vsel %vm574, 1.0, 0.0
    %v591 = vsel %vm575, 1.0, 0.0
    %v592 = vsel %vm576, 1.0, 0.0
    %v593 = vsel %vm577, 1.0, 0.0
    %v594 = vsel %vm578, 1.0, 0.0
    %v595 = vsel %vm579, 1.0, 0.0
    %v596 = vsel %vm580, 1.0, 0.0
    %v597 = vsel %vm581, 1.0, 0.0
    %v598 = vsel %vm582, 1.0, 0.0
    %v599 = vsel %vm24, %v566, %v26
    %v600 = vsel %vm23, %v466, %v599
    %601 = vmatprep.subr.mxu0 %v583
    %602 = vmatpush1.msra.mxu0 %v483
    %603 = vmatprep.subr.mxu0 %v584
    %604 = vmatpush1.msra.mxu0 %v484
    %605 = vmatprep.subr.mxu0 %v585
    %606 = vmatpush1.msra.mxu0 %v485
    %607 = vmatprep.subr.mxu0 %v586
    %608 = vmatpush1.msra.mxu0 %v486
    %609 = vmatprep.subr.mxu0 %v587
    %610 = vmatpush1.msra.mxu0 %v487
    %611 = vmatprep.subr.mxu0 %v588
    %612 = vmatpush1.msra.mxu0 %v488
    %613 = vmatprep.subr.mxu0 %v589
    %614 = vmatpush1.msra.mxu0 %v489
    %615 = vmatprep.subr.mxu0 %v590
    %616 = vmatpush1.msra.mxu0 %v490
    %617 = vmatprep.subr.mxu0 %v591
    %618 = vmatpush1.msra.mxu0 %v491
    %619 = vmatprep.subr.mxu0 %v592
    %620 = vmatpush1.msra.mxu0 %v492
    %621 = vmatprep.subr.mxu0 %v593
    %622 = vmatpush1.msra.mxu0 %v493
    %623 = vmatprep.subr.mxu0 %v594
    %624 = vmatpush1.msra.mxu0 %v494
    %625 = vmatprep.subr.mxu0 %v595
    %626 = vmatpush1.msra.mxu0 %v495
    %627 = vmatprep.subr.mxu0 %v596
    %628 = vmatpush1.msra.mxu0 %v496
    %629 = vmatprep.subr.mxu0 %v597
    %630 = vmatpush1.msra.mxu0 %v497
    %631 = vmatprep.subr.mxu0 %v598
    %632 = vmatpush1.msra.mxu0 %v498
    %633 = vmatprep.subr.mxu0 0.0
    %634 = vmatpush1.msra.mxu0 0.0
    %635 = vmatprep.subr.mxu0 0.0
    %636 = vmatpush1.msra.mxu0 0.0
    %637 = vmatprep.subr.mxu0 0.0
    %638 = vmatpush1.msra.mxu0 0.0
    %639 = vmatprep.subr.mxu0 0.0
    %640 = vmatpush1.msra.mxu0 0.0
    %641 = vmatprep.subr.mxu0 0.0
    %642 = vmatpush1.msra.mxu0 0.0
    %643 = vmatprep.subr.mxu0 0.0
    %644 = vmatpush1.msra.mxu0 0.0
    %645 = vmatprep.subr.mxu0 0.0
    %646 = vmatpush1.msra.mxu0 0.0
    %647 = vmatprep.subr.mxu0 0.0
    %648 = vmatpush1.msra.mxu0 0.0
    %649 = vmatprep.subr.mxu0 0.0
    %650 = vmatpush1.msra.mxu0 0.0
    %651 = vmatprep.subr.mxu0 0.0
    %652 = vmatpush1.msra.mxu0 0.0
    %653 = vmatprep.subr.mxu0 0.0
    %654 = vmatpush1.msra.mxu0 0.0
    %655 = vmatprep.subr.mxu0 0.0
    %656 = vmatpush1.msra.mxu0 0.0
    %657 = vmatprep.subr.mxu0 0.0
    %658 = vmatpush1.msra.mxu0 0.0
    %659 = vmatprep.subr.mxu0 0.0
    %660 = vmatpush1.msra.mxu0 0.0
    %661 = vmatprep.subr.mxu0 0.0
    %662 = vmatpush1.msra.mxu0 0.0
    %663 = vmatprep.subr.mxu0 0.0
    %664 = vmatpush1.msra.mxu0 0.0
    %665 = vmatprep.mubr.f32.mxu0 0.0
    %666 = vmatmul.mubr.f32.gmra.mrb[0].mxu0 %v600
    %v667 = vpop.f32.mrb[0].mxu0
    %v668 = vadd.f32 0.0, %v667
    %v669 = vpop.f32.mrb[0].mxu0
    %v670 = vadd.f32 0.0, %v669
    %671 = vdwg.mxu0
    %v672 = vrot.slane %v32, 2
    %v674 = vmul.f32 %v668, %v672
    %v675 = vadd.f32 %v674, 1.0
    %v677 = vrot.slane %v668, 1
    %vm679 = vcmp.gt.f32.partialorder %v675, %v677
    %v680 = vrot.slane %v383, 2
    %vm681 = vcmp.ne.s32.totalorder %v680, 0
    %vm682 = vmand %vm679, %vm681
    %v683 = vsel %vm682, 1.0, 0.0
    %v684 = vsel %vm362, %v683, 0.0
    %685 = vadd.xlane.f32.xlu0 %v684
    %v686 = vpop.xlane.xlu0 %685
    %v687 = vmax.f32 %v686, 1.0
    %v688 = vsel %vm682, %v672, 0.0
    %v689 = vsel %vm362, %v688, 0.0
    %690 = vadd.xlane.f32.xlu0 %v689
    %v691 = vpop.xlane.xlu0 %690
    %v692 = vsub.f32 %v691, 1.0
    %v693 = vrcp.pop %v687
    %v694 = vmul.f32 %v692, %v693
    %v695 = vrot.slane %v32, 3
    %v697 = vmul.f32 %v670, %v695
    %v698 = vadd.f32 %v697, 1.0
    %v700 = vrot.slane %v670, 2
    %vm702 = vcmp.gt.f32.partialorder %v698, %v700
    %v703 = vrot.slane %v383, 3
    %vm704 = vcmp.ne.s32.totalorder %v703, 0
    %vm705 = vmand %vm702, %vm704
    %v706 = vsel %vm705, 1.0, 0.0
    %v707 = vsel %vm362, %v706, 0.0
    %708 = vadd.xlane.f32.xlu0 %v707
    %v709 = vpop.xlane.xlu0 %708
    %v710 = vmax.f32 %v709, 1.0
    %v711 = vsel %vm705, %v695, 0.0
    %v712 = vsel %vm362, %v711, 0.0
    %713 = vadd.xlane.f32.xlu0 %v712
    %v714 = vpop.xlane.xlu0 %713
    %v715 = vsub.f32 %v714, 1.0
    %v716 = vrcp.pop %v710
    %v717 = vmul.f32 %v715, %v716
    %718 = vset.pattern.permute.xlu0 4
    %719 = vperm.xlu0 %718, %v49
    %v720 = vpop.permute.xlu0 %719
    %722 = vset.pattern.permute.xlu0 4
    %723 = vperm.xlu0 %722, %v50
    %v724 = vpop.permute.xlu0 %723
    %726 = vset.pattern.permute.xlu0 4
    %727 = vperm.xlu0 %726, %v51
    %v728 = vpop.permute.xlu0 %727
    %730 = vset.pattern.permute.xlu0 4
    %731 = vperm.xlu0 %730, %v52
    %v732 = vpop.permute.xlu0 %731
    %734 = vset.pattern.permute.xlu0 4
    %735 = vperm.xlu0 %734, %v53
    %v736 = vpop.permute.xlu0 %735
    %738 = vset.pattern.permute.xlu0 4
    %739 = vperm.xlu0 %738, %v54
    %v740 = vpop.permute.xlu0 %739
    %742 = vset.pattern.permute.xlu0 4
    %743 = vperm.xlu0 %742, %v55
    %v744 = vpop.permute.xlu0 %743
    %746 = vset.pattern.permute.xlu0 4
    %747 = vperm.xlu0 %746, %v56
    %v748 = vpop.permute.xlu0 %747
    %750 = vset.pattern.permute.xlu0 4
    %751 = vperm.xlu0 %750, %v57
    %v752 = vpop.permute.xlu0 %751
    %754 = vset.pattern.permute.xlu0 4
    %755 = vperm.xlu0 %754, %v58
    %v756 = vpop.permute.xlu0 %755
    %758 = vset.pattern.permute.xlu0 4
    %759 = vperm.xlu0 %758, %v59
    %v760 = vpop.permute.xlu0 %759
    %762 = vset.pattern.permute.xlu0 4
    %763 = vperm.xlu0 %762, %v60
    %v764 = vpop.permute.xlu0 %763
    %766 = vset.pattern.permute.xlu0 4
    %767 = vperm.xlu0 %766, %v61
    %v768 = vpop.permute.xlu0 %767
    %770 = vset.pattern.permute.xlu0 4
    %771 = vperm.xlu0 %770, %v62
    %v772 = vpop.permute.xlu0 %771
    %774 = vset.pattern.permute.xlu0 4
    %775 = vperm.xlu0 %774, %v63
    %v776 = vpop.permute.xlu0 %775
    %778 = vset.pattern.permute.xlu0 4
    %779 = vperm.xlu0 %778, %v64
    %v780 = vpop.permute.xlu0 %779
    %v782 = vlaneseq
    %v783 = vshrl.u32 %v782, 7
    %v784 = vsub.s32 4, %v783
    %v785 = vrot.slane %v32, %v784
    %vm786 = vcmp.ge.f32.partialorder %v720, %v785
    %vm787 = vcmp.ge.f32.partialorder %v724, %v785
    %vm788 = vcmp.ge.f32.partialorder %v728, %v785
    %vm789 = vcmp.ge.f32.partialorder %v732, %v785
    %vm790 = vcmp.ge.f32.partialorder %v736, %v785
    %vm791 = vcmp.ge.f32.partialorder %v740, %v785
    %vm792 = vcmp.ge.f32.partialorder %v744, %v785
    %vm793 = vcmp.ge.f32.partialorder %v748, %v785
    %vm794 = vcmp.ge.f32.partialorder %v752, %v785
    %vm795 = vcmp.ge.f32.partialorder %v756, %v785
    %vm796 = vcmp.ge.f32.partialorder %v760, %v785
    %vm797 = vcmp.ge.f32.partialorder %v764, %v785
    %vm798 = vcmp.ge.f32.partialorder %v768, %v785
    %vm799 = vcmp.ge.f32.partialorder %v772, %v785
    %vm800 = vcmp.ge.f32.partialorder %v776, %v785
    %vm801 = vcmp.ge.f32.partialorder %v780, %v785
    %v802 = vsel %vm786, 1.0, 0.0
    %v803 = vsel %vm787, 1.0, 0.0
    %v804 = vsel %vm788, 1.0, 0.0
    %v805 = vsel %vm789, 1.0, 0.0
    %v806 = vsel %vm790, 1.0, 0.0
    %v807 = vsel %vm791, 1.0, 0.0
    %v808 = vsel %vm792, 1.0, 0.0
    %v809 = vsel %vm793, 1.0, 0.0
    %v810 = vsel %vm794, 1.0, 0.0
    %v811 = vsel %vm795, 1.0, 0.0
    %v812 = vsel %vm796, 1.0, 0.0
    %v813 = vsel %vm797, 1.0, 0.0
    %v814 = vsel %vm798, 1.0, 0.0
    %v815 = vsel %vm799, 1.0, 0.0
    %v816 = vsel %vm800, 1.0, 0.0
    %v817 = vsel %vm801, 1.0, 0.0
    %818 = vset.pattern.permute.xlu0 5
    %819 = vperm.xlu0 %818, %v49
    %v820 = vpop.permute.xlu0 %819
    %822 = vset.pattern.permute.xlu0 5
    %823 = vperm.xlu0 %822, %v50
    %v824 = vpop.permute.xlu0 %823
    %826 = vset.pattern.permute.xlu0 5
    %827 = vperm.xlu0 %826, %v51
    %v828 = vpop.permute.xlu0 %827
    %830 = vset.pattern.permute.xlu0 5
    %831 = vperm.xlu0 %830, %v52
    %v832 = vpop.permute.xlu0 %831
    %834 = vset.pattern.permute.xlu0 5
    %835 = vperm.xlu0 %834, %v53
    %v836 = vpop.permute.xlu0 %835
    %838 = vset.pattern.permute.xlu0 5
    %839 = vperm.xlu0 %838, %v54
    %v840 = vpop.permute.xlu0 %839
    %842 = vset.pattern.permute.xlu0 5
    %843 = vperm.xlu0 %842, %v55
    %v844 = vpop.permute.xlu0 %843
    %846 = vset.pattern.permute.xlu0 5
    %847 = vperm.xlu0 %846, %v56
    %v848 = vpop.permute.xlu0 %847
    %850 = vset.pattern.permute.xlu0 5
    %851 = vperm.xlu0 %850, %v57
    %v852 = vpop.permute.xlu0 %851
    %854 = vset.pattern.permute.xlu0 5
    %855 = vperm.xlu0 %854, %v58
    %v856 = vpop.permute.xlu0 %855
    %858 = vset.pattern.permute.xlu0 5
    %859 = vperm.xlu0 %858, %v59
    %v860 = vpop.permute.xlu0 %859
    %862 = vset.pattern.permute.xlu0 5
    %863 = vperm.xlu0 %862, %v60
    %v864 = vpop.permute.xlu0 %863
    %866 = vset.pattern.permute.xlu0 5
    %867 = vperm.xlu0 %866, %v61
    %v868 = vpop.permute.xlu0 %867
    %870 = vset.pattern.permute.xlu0 5
    %871 = vperm.xlu0 %870, %v62
    %v872 = vpop.permute.xlu0 %871
    %874 = vset.pattern.permute.xlu0 5
    %875 = vperm.xlu0 %874, %v63
    %v876 = vpop.permute.xlu0 %875
    %878 = vset.pattern.permute.xlu0 5
    %879 = vperm.xlu0 %878, %v64
    %v880 = vpop.permute.xlu0 %879
    %v882 = vlaneseq
    %v883 = vshrl.u32 %v882, 7
    %v884 = vsub.s32 5, %v883
    %v885 = vrot.slane %v32, %v884
    %vm886 = vcmp.ge.f32.partialorder %v820, %v885
    %vm887 = vcmp.ge.f32.partialorder %v824, %v885
    %vm888 = vcmp.ge.f32.partialorder %v828, %v885
    %vm889 = vcmp.ge.f32.partialorder %v832, %v885
    %vm890 = vcmp.ge.f32.partialorder %v836, %v885
    %vm891 = vcmp.ge.f32.partialorder %v840, %v885
    %vm892 = vcmp.ge.f32.partialorder %v844, %v885
    %vm893 = vcmp.ge.f32.partialorder %v848, %v885
    %vm894 = vcmp.ge.f32.partialorder %v852, %v885
    %vm895 = vcmp.ge.f32.partialorder %v856, %v885
    %vm896 = vcmp.ge.f32.partialorder %v860, %v885
    %vm897 = vcmp.ge.f32.partialorder %v864, %v885
    %vm898 = vcmp.ge.f32.partialorder %v868, %v885
    %vm899 = vcmp.ge.f32.partialorder %v872, %v885
    %vm900 = vcmp.ge.f32.partialorder %v876, %v885
    %vm901 = vcmp.ge.f32.partialorder %v880, %v885
    %v902 = vsel %vm886, 1.0, 0.0
    %v903 = vsel %vm887, 1.0, 0.0
    %v904 = vsel %vm888, 1.0, 0.0
    %v905 = vsel %vm889, 1.0, 0.0
    %v906 = vsel %vm890, 1.0, 0.0
    %v907 = vsel %vm891, 1.0, 0.0
    %v908 = vsel %vm892, 1.0, 0.0
    %v909 = vsel %vm893, 1.0, 0.0
    %v910 = vsel %vm894, 1.0, 0.0
    %v911 = vsel %vm895, 1.0, 0.0
    %v912 = vsel %vm896, 1.0, 0.0
    %v913 = vsel %vm897, 1.0, 0.0
    %v914 = vsel %vm898, 1.0, 0.0
    %v915 = vsel %vm899, 1.0, 0.0
    %v916 = vsel %vm900, 1.0, 0.0
    %v917 = vsel %vm901, 1.0, 0.0
    %v918 = vsel %vm24, %v885, %v26
    %v919 = vsel %vm23, %v785, %v918
    %920 = vmatprep.subr.mxu0 %v902
    %921 = vmatpush1.msra.mxu0 %v802
    %922 = vmatprep.subr.mxu0 %v903
    %923 = vmatpush1.msra.mxu0 %v803
    %924 = vmatprep.subr.mxu0 %v904
    %925 = vmatpush1.msra.mxu0 %v804
    %926 = vmatprep.subr.mxu0 %v905
    %927 = vmatpush1.msra.mxu0 %v805
    %928 = vmatprep.subr.mxu0 %v906
    %929 = vmatpush1.msra.mxu0 %v806
    %930 = vmatprep.subr.mxu0 %v907
    %931 = vmatpush1.msra.mxu0 %v807
    %932 = vmatprep.subr.mxu0 %v908
    %933 = vmatpush1.msra.mxu0 %v808
    %934 = vmatprep.subr.mxu0 %v909
    %935 = vmatpush1.msra.mxu0 %v809
    %936 = vmatprep.subr.mxu0 %v910
    %937 = vmatpush1.msra.mxu0 %v810
    %938 = vmatprep.subr.mxu0 %v911
    %939 = vmatpush1.msra.mxu0 %v811
    %940 = vmatprep.subr.mxu0 %v912
    %941 = vmatpush1.msra.mxu0 %v812
    %942 = vmatprep.subr.mxu0 %v913
    %943 = vmatpush1.msra.mxu0 %v813
    %944 = vmatprep.subr.mxu0 %v914
    %945 = vmatpush1.msra.mxu0 %v814
    %946 = vmatprep.subr.mxu0 %v915
    %947 = vmatpush1.msra.mxu0 %v815
    %948 = vmatprep.subr.mxu0 %v916
    %949 = vmatpush1.msra.mxu0 %v816
    %950 = vmatprep.subr.mxu0 %v917
    %951 = vmatpush1.msra.mxu0 %v817
    %952 = vmatprep.subr.mxu0 0.0
    %953 = vmatpush1.msra.mxu0 0.0
    %954 = vmatprep.subr.mxu0 0.0
    %955 = vmatpush1.msra.mxu0 0.0
    %956 = vmatprep.subr.mxu0 0.0
    %957 = vmatpush1.msra.mxu0 0.0
    %958 = vmatprep.subr.mxu0 0.0
    %959 = vmatpush1.msra.mxu0 0.0
    %960 = vmatprep.subr.mxu0 0.0
    %961 = vmatpush1.msra.mxu0 0.0
    %962 = vmatprep.subr.mxu0 0.0
    %963 = vmatpush1.msra.mxu0 0.0
    %964 = vmatprep.subr.mxu0 0.0
    %965 = vmatpush1.msra.mxu0 0.0
    %966 = vmatprep.subr.mxu0 0.0
    %967 = vmatpush1.msra.mxu0 0.0
    %968 = vmatprep.subr.mxu0 0.0
    %969 = vmatpush1.msra.mxu0 0.0
    %970 = vmatprep.subr.mxu0 0.0
    %971 = vmatpush1.msra.mxu0 0.0
    %972 = vmatprep.subr.mxu0 0.0
    %973 = vmatpush1.msra.mxu0 0.0
    %974 = vmatprep.subr.mxu0 0.0
    %975 = vmatpush1.msra.mxu0 0.0
    %976 = vmatprep.subr.mxu0 0.0
    %977 = vmatpush1.msra.mxu0 0.0
    %978 = vmatprep.subr.mxu0 0.0
    %979 = vmatpush1.msra.mxu0 0.0
    %980 = vmatprep.subr.mxu0 0.0
    %981 = vmatpush1.msra.mxu0 0.0
    %982 = vmatprep.subr.mxu0 0.0
    %983 = vmatpush1.msra.mxu0 0.0
    %984 = vmatprep.mubr.f32.mxu0 0.0
    %985 = vmatmul.mubr.f32.gmra.mrb[0].mxu0 %v919
    %v986 = vpop.f32.mrb[0].mxu0
    %v987 = vadd.f32 0.0, %v986
    %v988 = vpop.f32.mrb[0].mxu0
    %v989 = vadd.f32 0.0, %v988
    %990 = vdwg.mxu0
    %v991 = vrot.slane %v32, 4
    %v993 = vmul.f32 %v987, %v991
    %v994 = vadd.f32 %v993, 1.0
    %v996 = vrot.slane %v987, 1
    %vm998 = vcmp.gt.f32.partialorder %v994, %v996
    %v999 = vrot.slane %v383, 4
    %vm1000 = vcmp.ne.s32.totalorder %v999, 0
    %vm1001 = vmand %vm998, %vm1000
    %v1002 = vsel %vm1001, 1.0, 0.0
    %v1003 = vsel %vm362, %v1002, 0.0
    %1004 = vadd.xlane.f32.xlu0 %v1003
    %v1005 = vpop.xlane.xlu0 %1004
    %v1006 = vmax.f32 %v1005, 1.0
    %v1007 = vsel %vm1001, %v991, 0.0
    %v1008 = vsel %vm362, %v1007, 0.0
    %1009 = vadd.xlane.f32.xlu0 %v1008
    %v1010 = vpop.xlane.xlu0 %1009
    %v1011 = vsub.f32 %v1010, 1.0
    %v1012 = vrcp.pop %v1006
    %v1013 = vmul.f32 %v1011, %v1012
    %v1014 = vrot.slane %v32, 5
    %v1016 = vmul.f32 %v989, %v1014
    %v1017 = vadd.f32 %v1016, 1.0
    %v1019 = vrot.slane %v989, 2
    %vm1021 = vcmp.gt.f32.partialorder %v1017, %v1019
    %v1022 = vrot.slane %v383, 5
    %vm1023 = vcmp.ne.s32.totalorder %v1022, 0
    %vm1024 = vmand %vm1021, %vm1023
    %v1025 = vsel %vm1024, 1.0, 0.0
    %v1026 = vsel %vm362, %v1025, 0.0
    %1027 = vadd.xlane.f32.xlu0 %v1026
    %v1028 = vpop.xlane.xlu0 %1027
    %v1029 = vmax.f32 %v1028, 1.0
    %v1030 = vsel %vm1024, %v1014, 0.0
    %v1031 = vsel %vm362, %v1030, 0.0
    %1032 = vadd.xlane.f32.xlu0 %v1031
    %v1033 = vpop.xlane.xlu0 %1032
    %v1034 = vsub.f32 %v1033, 1.0
    %v1035 = vrcp.pop %v1029
    %v1036 = vmul.f32 %v1034, %v1035
    %1037 = vset.pattern.permute.xlu0 6
    %1038 = vperm.xlu0 %1037, %v49
    %v1039 = vpop.permute.xlu0 %1038
    %1041 = vset.pattern.permute.xlu0 6
    %1042 = vperm.xlu0 %1041, %v50
    %v1043 = vpop.permute.xlu0 %1042
    %1045 = vset.pattern.permute.xlu0 6
    %1046 = vperm.xlu0 %1045, %v51
    %v1047 = vpop.permute.xlu0 %1046
    %1049 = vset.pattern.permute.xlu0 6
    %1050 = vperm.xlu0 %1049, %v52
    %v1051 = vpop.permute.xlu0 %1050
    %1053 = vset.pattern.permute.xlu0 6
    %1054 = vperm.xlu0 %1053, %v53
    %v1055 = vpop.permute.xlu0 %1054
    %1057 = vset.pattern.permute.xlu0 6
    %1058 = vperm.xlu0 %1057, %v54
    %v1059 = vpop.permute.xlu0 %1058
    %1061 = vset.pattern.permute.xlu0 6
    %1062 = vperm.xlu0 %1061, %v55
    %v1063 = vpop.permute.xlu0 %1062
    %1065 = vset.pattern.permute.xlu0 6
    %1066 = vperm.xlu0 %1065, %v56
    %v1067 = vpop.permute.xlu0 %1066
    %1069 = vset.pattern.permute.xlu0 6
    %1070 = vperm.xlu0 %1069, %v57
    %v1071 = vpop.permute.xlu0 %1070
    %1073 = vset.pattern.permute.xlu0 6
    %1074 = vperm.xlu0 %1073, %v58
    %v1075 = vpop.permute.xlu0 %1074
    %1077 = vset.pattern.permute.xlu0 6
    %1078 = vperm.xlu0 %1077, %v59
    %v1079 = vpop.permute.xlu0 %1078
    %1081 = vset.pattern.permute.xlu0 6
    %1082 = vperm.xlu0 %1081, %v60
    %v1083 = vpop.permute.xlu0 %1082
    %1085 = vset.pattern.permute.xlu0 6
    %1086 = vperm.xlu0 %1085, %v61
    %v1087 = vpop.permute.xlu0 %1086
    %1089 = vset.pattern.permute.xlu0 6
    %1090 = vperm.xlu0 %1089, %v62
    %v1091 = vpop.permute.xlu0 %1090
    %1093 = vset.pattern.permute.xlu0 6
    %1094 = vperm.xlu0 %1093, %v63
    %v1095 = vpop.permute.xlu0 %1094
    %1097 = vset.pattern.permute.xlu0 6
    %1098 = vperm.xlu0 %1097, %v64
    %v1099 = vpop.permute.xlu0 %1098
    %v1101 = vlaneseq
    %v1102 = vshrl.u32 %v1101, 7
    %v1103 = vsub.s32 6, %v1102
    %v1104 = vrot.slane %v32, %v1103
    %vm1105 = vcmp.ge.f32.partialorder %v1039, %v1104
    %vm1106 = vcmp.ge.f32.partialorder %v1043, %v1104
    %vm1107 = vcmp.ge.f32.partialorder %v1047, %v1104
    %vm1108 = vcmp.ge.f32.partialorder %v1051, %v1104
    %vm1109 = vcmp.ge.f32.partialorder %v1055, %v1104
    %vm1110 = vcmp.ge.f32.partialorder %v1059, %v1104
    %vm1111 = vcmp.ge.f32.partialorder %v1063, %v1104
    %vm1112 = vcmp.ge.f32.partialorder %v1067, %v1104
    %vm1113 = vcmp.ge.f32.partialorder %v1071, %v1104
    %vm1114 = vcmp.ge.f32.partialorder %v1075, %v1104
    %vm1115 = vcmp.ge.f32.partialorder %v1079, %v1104
    %vm1116 = vcmp.ge.f32.partialorder %v1083, %v1104
    %vm1117 = vcmp.ge.f32.partialorder %v1087, %v1104
    %vm1118 = vcmp.ge.f32.partialorder %v1091, %v1104
    %vm1119 = vcmp.ge.f32.partialorder %v1095, %v1104
    %vm1120 = vcmp.ge.f32.partialorder %v1099, %v1104
    %v1121 = vsel %vm1105, 1.0, 0.0
    %v1122 = vsel %vm1106, 1.0, 0.0
    %v1123 = vsel %vm1107, 1.0, 0.0
    %v1124 = vsel %vm1108, 1.0, 0.0
    %v1125 = vsel %vm1109, 1.0, 0.0
    %v1126 = vsel %vm1110, 1.0, 0.0
    %v1127 = vsel %vm1111, 1.0, 0.0
    %v1128 = vsel %vm1112, 1.0, 0.0
    %v1129 = vsel %vm1113, 1.0, 0.0
    %v1130 = vsel %vm1114, 1.0, 0.0
    %v1131 = vsel %vm1115, 1.0, 0.0
    %v1132 = vsel %vm1116, 1.0, 0.0
    %v1133 = vsel %vm1117, 1.0, 0.0
    %v1134 = vsel %vm1118, 1.0, 0.0
    %v1135 = vsel %vm1119, 1.0, 0.0
    %v1136 = vsel %vm1120, 1.0, 0.0
    %1137 = vset.pattern.permute.xlu0 7
    %1138 = vperm.xlu0 %1137, %v49
    %v1139 = vpop.permute.xlu0 %1138
    %1141 = vset.pattern.permute.xlu0 7
    %1142 = vperm.xlu0 %1141, %v50
    %v1143 = vpop.permute.xlu0 %1142
    %1145 = vset.pattern.permute.xlu0 7
    %1146 = vperm.xlu0 %1145, %v51
    %v1147 = vpop.permute.xlu0 %1146
    %1149 = vset.pattern.permute.xlu0 7
    %1150 = vperm.xlu0 %1149, %v52
    %v1151 = vpop.permute.xlu0 %1150
    %1153 = vset.pattern.permute.xlu0 7
    %1154 = vperm.xlu0 %1153, %v53
    %v1155 = vpop.permute.xlu0 %1154
    %1157 = vset.pattern.permute.xlu0 7
    %1158 = vperm.xlu0 %1157, %v54
    %v1159 = vpop.permute.xlu0 %1158
    %1161 = vset.pattern.permute.xlu0 7
    %1162 = vperm.xlu0 %1161, %v55
    %v1163 = vpop.permute.xlu0 %1162
    %1165 = vset.pattern.permute.xlu0 7
    %1166 = vperm.xlu0 %1165, %v56
    %v1167 = vpop.permute.xlu0 %1166
    %1169 = vset.pattern.permute.xlu0 7
    %1170 = vperm.xlu0 %1169, %v57
    %v1171 = vpop.permute.xlu0 %1170
    %1173 = vset.pattern.permute.xlu0 7
    %1174 = vperm.xlu0 %1173, %v58
    %v1175 = vpop.permute.xlu0 %1174
    %1177 = vset.pattern.permute.xlu0 7
    %1178 = vperm.xlu0 %1177, %v59
    %v1179 = vpop.permute.xlu0 %1178
    %1181 = vset.pattern.permute.xlu0 7
    %1182 = vperm.xlu0 %1181, %v60
    %v1183 = vpop.permute.xlu0 %1182
    %1185 = vset.pattern.permute.xlu0 7
    %1186 = vperm.xlu0 %1185, %v61
    %v1187 = vpop.permute.xlu0 %1186
    %1189 = vset.pattern.permute.xlu0 7
    %1190 = vperm.xlu0 %1189, %v62
    %v1191 = vpop.permute.xlu0 %1190
    %1193 = vset.pattern.permute.xlu0 7
    %1194 = vperm.xlu0 %1193, %v63
    %v1195 = vpop.permute.xlu0 %1194
    %1197 = vset.pattern.permute.xlu0 7
    %1198 = vperm.xlu0 %1197, %v64
    %v1199 = vpop.permute.xlu0 %1198
    %v1201 = vlaneseq
    %v1202 = vshrl.u32 %v1201, 7
    %v1203 = vsub.s32 7, %v1202
    %v1204 = vrot.slane %v32, %v1203
    %vm1205 = vcmp.ge.f32.partialorder %v1139, %v1204
    %vm1206 = vcmp.ge.f32.partialorder %v1143, %v1204
    %vm1207 = vcmp.ge.f32.partialorder %v1147, %v1204
    %vm1208 = vcmp.ge.f32.partialorder %v1151, %v1204
    %vm1209 = vcmp.ge.f32.partialorder %v1155, %v1204
    %vm1210 = vcmp.ge.f32.partialorder %v1159, %v1204
    %vm1211 = vcmp.ge.f32.partialorder %v1163, %v1204
    %vm1212 = vcmp.ge.f32.partialorder %v1167, %v1204
    %vm1213 = vcmp.ge.f32.partialorder %v1171, %v1204
    %vm1214 = vcmp.ge.f32.partialorder %v1175, %v1204
    %vm1215 = vcmp.ge.f32.partialorder %v1179, %v1204
    %vm1216 = vcmp.ge.f32.partialorder %v1183, %v1204
    %vm1217 = vcmp.ge.f32.partialorder %v1187, %v1204
    %vm1218 = vcmp.ge.f32.partialorder %v1191, %v1204
    %vm1219 = vcmp.ge.f32.partialorder %v1195, %v1204
    %vm1220 = vcmp.ge.f32.partialorder %v1199, %v1204
    %v1221 = vsel %vm1205, 1.0, 0.0
    %v1222 = vsel %vm1206, 1.0, 0.0
    %v1223 = vsel %vm1207, 1.0, 0.0
    %v1224 = vsel %vm1208, 1.0, 0.0
    %v1225 = vsel %vm1209, 1.0, 0.0
    %v1226 = vsel %vm1210, 1.0, 0.0
    %v1227 = vsel %vm1211, 1.0, 0.0
    %v1228 = vsel %vm1212, 1.0, 0.0
    %v1229 = vsel %vm1213, 1.0, 0.0
    %v1230 = vsel %vm1214, 1.0, 0.0
    %v1231 = vsel %vm1215, 1.0, 0.0
    %v1232 = vsel %vm1216, 1.0, 0.0
    %v1233 = vsel %vm1217, 1.0, 0.0
    %v1234 = vsel %vm1218, 1.0, 0.0
    %v1235 = vsel %vm1219, 1.0, 0.0
    %v1236 = vsel %vm1220, 1.0, 0.0
    %v1237 = vsel %vm24, %v1204, %v26
    %v1238 = vsel %vm23, %v1104, %v1237
    %1239 = vmatprep.subr.mxu0 %v1221
    %1240 = vmatpush1.msra.mxu0 %v1121
    %1241 = vmatprep.subr.mxu0 %v1222
    %1242 = vmatpush1.msra.mxu0 %v1122
    %1243 = vmatprep.subr.mxu0 %v1223
    %1244 = vmatpush1.msra.mxu0 %v1123
    %1245 = vmatprep.subr.mxu0 %v1224
    %1246 = vmatpush1.msra.mxu0 %v1124
    %1247 = vmatprep.subr.mxu0 %v1225
    %1248 = vmatpush1.msra.mxu0 %v1125
    %1249 = vmatprep.subr.mxu0 %v1226
    %1250 = vmatpush1.msra.mxu0 %v1126
    %1251 = vmatprep.subr.mxu0 %v1227
    %1252 = vmatpush1.msra.mxu0 %v1127
    %1253 = vmatprep.subr.mxu0 %v1228
    %1254 = vmatpush1.msra.mxu0 %v1128
    %1255 = vmatprep.subr.mxu0 %v1229
    %1256 = vmatpush1.msra.mxu0 %v1129
    %1257 = vmatprep.subr.mxu0 %v1230
    %1258 = vmatpush1.msra.mxu0 %v1130
    %1259 = vmatprep.subr.mxu0 %v1231
    %1260 = vmatpush1.msra.mxu0 %v1131
    %1261 = vmatprep.subr.mxu0 %v1232
    %1262 = vmatpush1.msra.mxu0 %v1132
    %1263 = vmatprep.subr.mxu0 %v1233
    %1264 = vmatpush1.msra.mxu0 %v1133
    %1265 = vmatprep.subr.mxu0 %v1234
    %1266 = vmatpush1.msra.mxu0 %v1134
    %1267 = vmatprep.subr.mxu0 %v1235
    %1268 = vmatpush1.msra.mxu0 %v1135
    %1269 = vmatprep.subr.mxu0 %v1236
    %1270 = vmatpush1.msra.mxu0 %v1136
    %1271 = vmatprep.subr.mxu0 0.0
    %1272 = vmatpush1.msra.mxu0 0.0
    %1273 = vmatprep.subr.mxu0 0.0
    %1274 = vmatpush1.msra.mxu0 0.0
    %1275 = vmatprep.subr.mxu0 0.0
    %1276 = vmatpush1.msra.mxu0 0.0
    %1277 = vmatprep.subr.mxu0 0.0
    %1278 = vmatpush1.msra.mxu0 0.0
    %1279 = vmatprep.subr.mxu0 0.0
    %1280 = vmatpush1.msra.mxu0 0.0
    %1281 = vmatprep.subr.mxu0 0.0
    %1282 = vmatpush1.msra.mxu0 0.0
    %1283 = vmatprep.subr.mxu0 0.0
    %1284 = vmatpush1.msra.mxu0 0.0
    %1285 = vmatprep.subr.mxu0 0.0
    %1286 = vmatpush1.msra.mxu0 0.0
    %1287 = vmatprep.subr.mxu0 0.0
    %1288 = vmatpush1.msra.mxu0 0.0
    %1289 = vmatprep.subr.mxu0 0.0
    %1290 = vmatpush1.msra.mxu0 0.0
    %1291 = vmatprep.subr.mxu0 0.0
    %1292 = vmatpush1.msra.mxu0 0.0
    %1293 = vmatprep.subr.mxu0 0.0
    %1294 = vmatpush1.msra.mxu0 0.0
    %1295 = vmatprep.subr.mxu0 0.0
    %1296 = vmatpush1.msra.mxu0 0.0
    %1297 = vmatprep.subr.mxu0 0.0
    %1298 = vmatpush1.msra.mxu0 0.0
    %1299 = vmatprep.subr.mxu0 0.0
    %1300 = vmatpush1.msra.mxu0 0.0
    %1301 = vmatprep.subr.mxu0 0.0
    %1302 = vmatpush1.msra.mxu0 0.0
    %1303 = vmatprep.mubr.f32.mxu0 0.0
    %1304 = vmatmul.mubr.f32.gmra.mrb[0].mxu0 %v1238
    %v1305 = vpop.f32.mrb[0].mxu0
    %v1306 = vadd.f32 0.0, %v1305
    %v1307 = vpop.f32.mrb[0].mxu0
    %v1308 = vadd.f32 0.0, %v1307
    %1309 = vdwg.mxu0
    %v1310 = vrot.slane %v32, 6
    %v1312 = vmul.f32 %v1306, %v1310
    %v1313 = vadd.f32 %v1312, 1.0
    %v1315 = vrot.slane %v1306, 1
    %vm1317 = vcmp.gt.f32.partialorder %v1313, %v1315
    %v1318 = vrot.slane %v383, 6
    %vm1319 = vcmp.ne.s32.totalorder %v1318, 0
    %vm1320 = vmand %vm1317, %vm1319
    %v1321 = vsel %vm1320, 1.0, 0.0
    %v1322 = vsel %vm362, %v1321, 0.0
    %1323 = vadd.xlane.f32.xlu0 %v1322
    %v1324 = vpop.xlane.xlu0 %1323
    %v1325 = vmax.f32 %v1324, 1.0
    %v1326 = vsel %vm1320, %v1310, 0.0
    %v1327 = vsel %vm362, %v1326, 0.0
    %1328 = vadd.xlane.f32.xlu0 %v1327
    %v1329 = vpop.xlane.xlu0 %1328
    %v1330 = vsub.f32 %v1329, 1.0
    %v1331 = vrcp.pop %v1325
    %v1332 = vmul.f32 %v1330, %v1331
    %v1333 = vrot.slane %v32, 7
    %v1335 = vmul.f32 %v1308, %v1333
    %v1336 = vadd.f32 %v1335, 1.0
    %v1338 = vrot.slane %v1308, 2
    %vm1340 = vcmp.gt.f32.partialorder %v1336, %v1338
    %v1341 = vrot.slane %v383, 7
    %vm1342 = vcmp.ne.s32.totalorder %v1341, 0
    %vm1343 = vmand %vm1340, %vm1342
    %v1344 = vsel %vm1343, 1.0, 0.0
    %v1345 = vsel %vm362, %v1344, 0.0
    %1346 = vadd.xlane.f32.xlu0 %v1345
    %v1347 = vpop.xlane.xlu0 %1346
    %v1348 = vmax.f32 %v1347, 1.0
    %v1349 = vsel %vm1343, %v1333, 0.0
    %v1350 = vsel %vm362, %v1349, 0.0
    %1351 = vadd.xlane.f32.xlu0 %v1350
    %v1352 = vpop.xlane.xlu0 %1351
    %v1353 = vsub.f32 %v1352, 1.0
    %v1354 = vrcp.pop %v1348
    %v1355 = vmul.f32 %v1353, %v1354
    %v1357 = vrot.slane %v398, 7
    %v1360 = vrot.slane %v694, 6
    %v1363 = vrot.slane %v717, 5
    %v1366 = vrot.slane %v1013, 4
    %v1369 = vrot.slane %v1036, 3
    %v1372 = vrot.slane %v1332, 2
    %v1375 = vrot.slane %v1355, 1
    %v1377 = vsel %vm362, %v373, %v1357
    %vm1378 = vcmask 1041408
    %v1379 = vsel %vm1378, %v1377, %v1360
    %vm1380 = vcmask 1042432
    %v1381 = vsel %vm1380, %v1379, %v1363
    %vm1382 = vcmask 1043456
    %v1383 = vsel %vm1382, %v1381, %v1366
    %vm1384 = vcmask 1044480
    %v1385 = vsel %vm1384, %v1383, %v1369
    %vm1386 = vcmask 1045504
    %v1387 = vsel %vm1386, %v1385, %v1372
    %vm1388 = vcmask 1046528
    %v1389 = vsel %vm1388, %v1387, %v1375
    %1391 = vset.pattern.permute.xlu0 0
    %1392 = vperm.xlu0 %1391, %v1389
    %v1393 = vpop.permute.xlu0 %1392
    %v1395 = vsub.f32 %v32, %v1393
    %v1396 = vmax.f32 %v1395, 0.0
    %1397 = vst [vmem:[#allocation5] sm:$0xff] %v1396
    // Predicated region
    $region10: #{tpu_custom_call.1} parent=1 // pred_check
      _
    $region11: #{tpu_custom_call.1} parent=1 // pred_check_branch
      %1399 = sbr.rel (0) target = $region13
    $region12: #{tpu_custom_call.1} parent=1 // pred_region
      %s1401 = ssub.s32 128, 128
      %1402 = vsyncadd [#allocation4], %s1401
      %s1404 = sshll.u32 [#allocation5], 4
      %s1405 = int_to_ptr.vmem [resolvable:$true] %s1404
      %1407 = dma.vmem_to_hbm [thread:$0]  %s1405, 128, %s1, [#allocation4]
    $region13: #{tpu_custom_call.1} parent=1 // pred_fallthru
      _
    // Predicated region
    $region14: #{tpu_custom_call.1} parent=1 // pred_check
      _
    $region15: #{tpu_custom_call.1} parent=1 // pred_check_branch
      %1409 = sbr.rel (0) target = $region17
    $region16: #{tpu_custom_call.1} parent=1 // pred_region
      %1410 = dma.done [#allocation4], 128
    $region17: #{tpu_custom_call.1} parent=1 // pred_fallthru
      _
    %1411 = vsyncpa [#allocation3], 1
    %1412 = vsyncpa [#allocation4], 1

</llo_original>
